<compile_context>
chip_gen: v5e
topology: v5e:2x2
jax: 0.10.0
libtpu: 0.0.40
codegen_flags: <defaults>
</compile_context>

<pallas_src>
import functools

import jax
import jax.numpy as jnp
from jax import lax
from jax.experimental import pallas as pl
from jax.experimental.pallas import tpu as pltpu


# bf16 activations / matmul operands only when a TPU backend is present
# (f32 accumulation either way).  On CPU fall back to f32 end to end.
_ON_TPU = any(d.platform == "tpu" for d in jax.devices())
_ACT_DTYPE = jnp.bfloat16 if _ON_TPU else jnp.float32

# Per-input-block VMEM budget for the conv kernels.  With double-buffering the
# activation stream stays < ~10 MiB total, inside the default scoped VMEM on
# every generation (v5e 16 MiB, v6e/v7x 32 MiB).
_VMEM_BLOCK_BUDGET = 4 * 1024 * 1024


def _pick_tile(m, per_col_bytes, target=2048):
    """Largest lane tile <= target (and <= VMEM budget) that is full-extent or a
    128-multiple divisor of m.  Ragged fallback is safe here: every kernel op is
    column-independent and the writeback of the partial tile is masked.
    NOTE(v7x): at production MRI sizes the resulting grid is long (>=4 steps) so
    both TensorCores stay busy; at the demo sizes the grid is 1 anyway."""
    budget_cols = max(128, (_VMEM_BLOCK_BUDGET // per_col_bytes) // 128 * 128)
    target = min(target, budget_cols)
    if m <= target:
        return m
    t = (target // 128) * 128
    while t >= 128:
        if m % t == 0:
            return t
        t -= 128
    return (target // 128) * 128  # ragged last tile; Pallas masks the writeback


# --------------------------------------------------------------------------
# Pallas kernels
# --------------------------------------------------------------------------
def _conv_pool_kernel(w_ref, a_ref, b_ref, o_ref, *, pool, act):
    """out = relu(maxpool(W @ A_p + bias)) with the P pooling-window offsets as
    the leading axis of A.  All epilogue math in f32 (v5e has no bf16 VPU)."""
    # TODO(synk): with Cout<=16 only 8-16 MXU rows stream per weight load; once
    #             the im2col duplication is removed, flip the orientation so the
    #             large tm dimension streams against a stationary W^T.
    w = w_ref[...]
    acc = jnp.dot(w, a_ref[0], preferred_element_type=jnp.float32)
    for p in range(1, pool):                       # static unroll, P in {1,4,8}
        acc = jnp.maximum(
            acc, jnp.dot(w, a_ref[p], preferred_element_type=jnp.float32))
    acc = acc + b_ref[...]                         # (Cout, 1) broadcast over lanes
    if act == "relu":
        acc = jnp.maximum(acc, 0.0)
    o_ref[...] = acc.astype(o_ref.dtype)


def _fc_fused_kernel(x_ref, w1_ref, b1_ref, w2_ref, b2_ref, w3_ref, b3_ref, o_ref):
    h = jnp.dot(x_ref[...], w1_ref[...], preferred_element_type=jnp.float32) + b1_ref[...]
    h = jnp.maximum(h, 0.0).astype(w2_ref.dtype)
    h = jnp.dot(h, w2_ref[...], preferred_element_type=jnp.float32) + b2_ref[...]
    h = jnp.maximum(h, 0.0).astype(w3_ref.dtype)
    h = jnp.dot(h, w3_ref[...], preferred_element_type=jnp.float32) + b3_ref[...]
    o_ref[...] = jax.nn.sigmoid(h)


# --------------------------------------------------------------------------
# Layer wrappers (the tap gather / window grouping is plain-JAX glue)
# --------------------------------------------------------------------------
def conv_pool_matmul(w_mat, a, bias, act, target_tm=2048):
    """a: (P, K, M_pool) ACT_DTYPE, w_mat: (Cout, K) ACT_DTYPE, bias: (Cout,1) f32.
    Returns (Cout, M_pool) = relu(maxpool_P(W @ A + b))."""
    c_out, k = w_mat.shape
    p_win, k2, m = a.shape
    assert k == k2
    per_col_bytes = p_win * k * jnp.dtype(_ACT_DTYPE).itemsize
    tm = _pick_tile(m, per_col_bytes, target_tm)
    return pl.pallas_call(
        functools.partial(_conv_pool_kernel, pool=p_win, act=act),
        out_shape=jax.ShapeDtypeStruct((c_out, m), _ACT_DTYPE),
        grid=(pl.cdiv(m, tm),),
        in_specs=[
            pl.BlockSpec((c_out, k), lambda i: (0, 0)),
            pl.BlockSpec((p_win, k, tm), lambda i: (0, 0, i)),
            pl.BlockSpec((c_out, 1), lambda i: (0, 0)),
        ],
        out_specs=pl.BlockSpec((c_out, tm), lambda i: (0, i)),
        compiler_params=pltpu.CompilerParams(dimension_semantics=("parallel",)),
    )(w_mat, a, bias)


def conv3d_block(x, w_dhwio, b, stride, padding, pool, act):
    """Conv3d (+ optional fused MaxPool3d) + ReLU.
    x: (Cin, N, D, H, W); w_dhwio: (kd, kh, kw, Cin, Cout); pool=(1,1,1) -> no pool."""
    c_in, n, d, h, w = x.shape
    kd, kh, kw, _, c_out = w_dhwio.shape
    sd, sh, sw = stride
    pd, ph, pw = padding
    do = (d + 2 * pd - kd) // sd + 1
    ho = (h + 2 * ph - kh) // sh + 1
    wo = (w + 2 * pw - kw) // sw + 1
    qd, qh, qw = pool
    dp, hp, wp = do // qd, ho // qh, wo // qw       # PyTorch MaxPool3d floors
    de, he, we = dp * qd, hp * qh, wp * qw          # conv extent the pool consumes
    p_win = qd * qh * qw
    m_pool = n * dp * hp * wp
    n_taps = kd * kh * kw

    xp = jnp.pad(x, ((0, 0), (0, 0), (pd, pd), (ph, ph), (pw, pw)))
    taps = []
    for i in range(kd):
        for j in range(kh):
            for k in range(kw):
                t = xp[:, :, i:i + sd * (de - 1) + 1:sd,
                          j:j + sh * (he - 1) + 1:sh,
                          k:k + sw * (we - 1) + 1:sw]          # (Cin, N, de, he, we)
                t = t.reshape(c_in, n, dp, qd, hp, qh, wp, qw)
                t = jnp.transpose(t, (3, 5, 7, 0, 1, 2, 4, 6))  # (qd,qh,qw,Cin,N,dp,hp,wp)
                taps.append(t.reshape(p_win, c_in, m_pool))
    # (P, taps, Cin, M) -> (P, K, M); K ordering (tap, cin) matches the DHWIO reshape.
    a = jnp.stack(taps, axis=1).reshape(p_win, n_taps * c_in, m_pool).astype(_ACT_DTYPE)
    w_mat = w_dhwio.reshape(n_taps * c_in, c_out).T.astype(_ACT_DTYPE)
    bias = b.reshape(c_out, 1).astype(jnp.float32)

    out = conv_pool_matmul(w_mat, a, bias, act=act)            # (Cout, M_pool)
    return out.reshape(c_out, n, dp, hp, wp)


def fc_stack(flat, p):
    """Fused fc1 -> fc2 -> fc3(sigmoid) in a single Pallas call.  flat: (N, F)."""
    n, _ = flat.shape
    n_pad = max(8, ((n + 7) // 8) * 8)
    x = jnp.pad(flat, ((0, n_pad - n), (0, 0))).astype(_ACT_DTYPE)
    n_out = p["fc3_w"].shape[1]
    out_pad = 128                                   # lane-dense output; slice 2 cols outside
    w3 = jnp.pad(p["fc3_w"], ((0, 0), (0, out_pad - n_out))).astype(_ACT_DTYPE)
    b3 = jnp.pad(p["fc3_b"], (0, out_pad - n_out)).reshape(1, out_pad).astype(jnp.float32)
    args = (
        x,
        p["fc1_w"].astype(_ACT_DTYPE), p["fc1_b"].reshape(1, -1).astype(jnp.float32),
        p["fc2_w"].astype(_ACT_DTYPE), p["fc2_b"].reshape(1, -1).astype(jnp.float32),
        w3, b3,
    )
    out = pl.pallas_call(
        _fc_fused_kernel,
        out_shape=jax.ShapeDtypeStruct((n_pad, out_pad), jnp.float32),
        grid=(1,),
        in_specs=[pl.BlockSpec(a.shape, lambda i: (0, 0)) for a in args],
        out_specs=pl.BlockSpec((n_pad, out_pad), lambda i: (0, 0)),
    )(*args)
    return out[:n, :n_out]


# --------------------------------------------------------------------------
# Discriminator
# --------------------------------------------------------------------------
def init_params(key, fc1_in):
    ks = jax.random.split(key, 14)
    s = 0.1

    def nrm(k, shape):
        return s * jax.random.normal(k, shape, dtype=jnp.float32)

    return {
        # conv weights in DHWIO layout
        "w1": nrm(ks[0], (3, 3, 3, 1, 8)),    "b1": nrm(ks[1], (8,)),
        "w2": nrm(ks[2], (3, 3, 3, 8, 16)),   "b2": nrm(ks[3], (16,)),
        "w4": nrm(ks[4], (3, 3, 3, 16, 16)),  "b4": nrm(ks[5], (16,)),
        "w5": nrm(ks[6], (3, 3, 3, 16, 16)),  "b5": nrm(ks[7], (16,)),
        "fc1_w": nrm(ks[8], (fc1_in, 128)),   "fc1_b": nrm(ks[9], (128,)),
        "fc2_w": nrm(ks[10], (128, 128)),     "fc2_b": nrm(ks[11], (128,)),
        "fc3_w": nrm(ks[12], (128, 2)),       "fc3_b": nrm(ks[13], (2,)),
    }


def discriminator_forward(params, img_ncdhw):
    # NCDHW -> channels-first (C, N, D, H, W): lane-dense flattened-spatial minor axis.
    x = jnp.transpose(img_ncdhw, (1, 0, 2, 3, 4)).astype(_ACT_DTYPE)
    # layer1: Conv3d(1,8,k3,s2,p1) -> MaxPool3d(2) -> ReLU   (pool fused into the conv kernel)
    x = conv3d_block(x, params["w1"], params["b1"], (2, 2, 2), (1, 1, 1), pool=(2, 2, 2), act="relu")
    # layer2: Conv3d(8,16,k3,s2,p1) -> ReLU
    x = conv3d_block(x, params["w2"], params["b2"], (2, 2, 2), (1, 1, 1), pool=(1, 1, 1), act="relu")
    # layer4: Conv3d(16,16,k3,s=(1,2,1),p=(1,0,1)) -> MaxPool3d((1,2,2)) -> ReLU   (fused)
    x = conv3d_block(x, params["w4"], params["b4"], (1, 2, 1), (1, 0, 1), pool=(1, 2, 2), act="relu")
    # layer5: Conv3d(16,16,k3,s2,p1) -> ReLU
    x = conv3d_block(x, params["w5"], params["b5"], (2, 2, 2), (1, 1, 1), pool=(1, 1, 1), act="relu")
    # flatten per sample in PyTorch (C, D, H, W) order -> fused fc1/fc2/fc3(sigmoid)
    n = x.shape[1]
    flat = jnp.transpose(x, (1, 0, 2, 3, 4)).reshape(n, -1)
    return fc_stack(flat, params)


# --------------------------------------------------------------------------
# Pure-JAX reference (correctness sanity check)
# --------------------------------------------------------------------------
def reference_forward(params, img_ncdhw):
    x = jnp.transpose(img_ncdhw, (0, 2, 3, 4, 1)).astype(jnp.float32)

    def conv(x, w, b, stride, pad):
        y = lax.conv_general_dilated(
            x, w, window_strides=stride,
            padding=[(pad[0], pad[0]), (pad[1], pad[1]), (pad[2], pad[2])],
            dimension_numbers=("NDHWC", "DHWIO", "NDHWC"))
        return y + b

    def pool(x, win):
        return lax.reduce_window(x, -jnp.inf, lax.max,
                                 (1,) + win + (1,), (1,) + win + (1,), "VALID")

    x = jax.nn.relu(pool(conv(x, params["w1"], params["b1"], (2, 2, 2), (1, 1, 1)), (2, 2, 2)))
    x = jax.nn.relu(conv(x, params["w2"], params["b2"], (2, 2, 2), (1, 1, 1)))
    x = jax.nn.relu(pool(conv(x, params["w4"], params["b4"], (1, 2, 1), (1, 0, 1)), (1, 2, 2)))
    x = jax.nn.relu(conv(x, params["w5"], params["b5"], (2, 2, 2), (1, 1, 1)))
    # NDHWC -> per-sample (C, D, H, W) flatten to match PyTorch ordering
    x = jnp.transpose(x, (0, 4, 1, 2, 3)).reshape(x.shape[0], -1)
    h = jax.nn.relu(x @ params["fc1_w"] + params["fc1_b"])
    h = jax.nn.relu(h @ params["fc2_w"] + params["fc2_b"])
    return jax.nn.sigmoid(h @ params["fc3_w"] + params["fc3_b"])


# --------------------------------------------------------------------------
if __name__ == "__main__":
    key = jax.random.PRNGKey(0)
    k_img, k_params = jax.random.split(key)

    # Small demo MRI volume (N, C, D, H, W); flattened conv output -> 16 features.
    img = jax.random.normal(k_img, (2, 1, 16, 40, 16), dtype=jnp.float32)
    params = init_params(k_params, fc1_in=16)

    fwd = jax.jit(discriminator_forward)
    out = jax.block_until_ready(fwd(params, img))
    assert out.shape == (2, 2), out.shape

    ref = jax.block_until_ready(jax.jit(reference_forward)(params, img))
    # bf16 activations / im2col on TPU -> loose tolerance (intentional precision
    # trade; accumulation stays f32).  On CPU the path is f32 and near-exact.
    assert jnp.allclose(out, ref, atol=2.5e-2, rtol=2.5e-2), (out, ref)

    print("KERNEL_OK")
</pallas_src>

<mosaic_0001>
module attributes {stable_mosaic.version = 11 : i64} {
  func.func @_conv_pool_kernel(%arg0: i32, %arg1: memref<8x27xf32, #tpu.memory_space<vmem>>, %arg2: memref<8x27x320xf32, #tpu.memory_space<vmem>>, %arg3: memref<8x1xf32, #tpu.memory_space<vmem>>, %arg4: memref<8x320xf32, #tpu.memory_space<vmem>>) attributes {dimension_semantics = [#tpu.dimension_semantics<parallel>], iteration_bounds = array<i64: 1>, scalar_prefetch = 0 : i64, scratch_operands = 0 : i64, tpu.core_type = #tpu.core_type<tc>, window_params = [{pipeline_mode = #tpu.pipeline_mode<synchronous>, transform_indices = @transform_0, window_bounds = array<i64: 8, 27>}, {transform_indices = @transform_1, window_bounds = array<i64: 8, 27, 320>}, {pipeline_mode = #tpu.pipeline_mode<synchronous>, transform_indices = @transform_2, window_bounds = array<i64: 8, 1>}, {transform_indices = @transform_3, window_bounds = array<i64: 8, 320>}]} {
    %c0 = arith.constant 0 : index
    %c0_0 = arith.constant 0 : index
    %0 = vector.load %arg1[%c0, %c0_0] : memref<8x27xf32, #tpu.memory_space<vmem>>, vector<8x27xf32>
    %c0_1 = arith.constant 0 : index
    %c0_2 = arith.constant 0 : index
    %c0_3 = arith.constant 0 : index
    %1 = vector.load %arg2[%c0_1, %c0_2, %c0_3] : memref<8x27x320xf32, #tpu.memory_space<vmem>>, vector<1x27x320xf32>
    %2 = vector.shape_cast %1 : vector<1x27x320xf32> to vector<27x320xf32>
    %cst = arith.constant dense<0.000000e+00> : vector<8x320xf32>
    %3 = tpu.matmul %0, %2, %cst {dimension_numbers = #tpu.dot_dimension_numbers<[1], [0], [0], [1], [0, 0, 1, 1], [], []>} : vector<8x27xf32>, vector<27x320xf32>, vector<8x320xf32> -> vector<8x320xf32>
    %c1 = arith.constant 1 : index
    %c0_4 = arith.constant 0 : index
    %c0_5 = arith.constant 0 : index
    %4 = vector.load %arg2[%c1, %c0_4, %c0_5] : memref<8x27x320xf32, #tpu.memory_space<vmem>>, vector<1x27x320xf32>
    %5 = vector.shape_cast %4 : vector<1x27x320xf32> to vector<27x320xf32>
    %cst_6 = arith.constant dense<0.000000e+00> : vector<8x320xf32>
    %6 = tpu.matmul %0, %5, %cst_6 {dimension_numbers = #tpu.dot_dimension_numbers<[1], [0], [0], [1], [0, 0, 1, 1], [], []>} : vector<8x27xf32>, vector<27x320xf32>, vector<8x320xf32> -> vector<8x320xf32>
    %7 = arith.maximumf %3, %6 : vector<8x320xf32>
    %c2 = arith.constant 2 : index
    %c0_7 = arith.constant 0 : index
    %c0_8 = arith.constant 0 : index
    %8 = vector.load %arg2[%c2, %c0_7, %c0_8] : memref<8x27x320xf32, #tpu.memory_space<vmem>>, vector<1x27x320xf32>
    %9 = vector.shape_cast %8 : vector<1x27x320xf32> to vector<27x320xf32>
    %cst_9 = arith.constant dense<0.000000e+00> : vector<8x320xf32>
    %10 = tpu.matmul %0, %9, %cst_9 {dimension_numbers = #tpu.dot_dimension_numbers<[1], [0], [0], [1], [0, 0, 1, 1], [], []>} : vector<8x27xf32>, vector<27x320xf32>, vector<8x320xf32> -> vector<8x320xf32>
    %11 = arith.maximumf %7, %10 : vector<8x320xf32>
    %c3 = arith.constant 3 : index
    %c0_10 = arith.constant 0 : index
    %c0_11 = arith.constant 0 : index
    %12 = vector.load %arg2[%c3, %c0_10, %c0_11] : memref<8x27x320xf32, #tpu.memory_space<vmem>>, vector<1x27x320xf32>
    %13 = vector.shape_cast %12 : vector<1x27x320xf32> to vector<27x320xf32>
    %cst_12 = arith.constant dense<0.000000e+00> : vector<8x320xf32>
    %14 = tpu.matmul %0, %13, %cst_12 {dimension_numbers = #tpu.dot_dimension_numbers<[1], [0], [0], [1], [0, 0, 1, 1], [], []>} : vector<8x27xf32>, vector<27x320xf32>, vector<8x320xf32> -> vector<8x320xf32>
    %15 = arith.maximumf %11, %14 : vector<8x320xf32>
    %c4 = arith.constant 4 : index
    %c0_13 = arith.constant 0 : index
    %c0_14 = arith.constant 0 : index
    %16 = vector.load %arg2[%c4, %c0_13, %c0_14] : memref<8x27x320xf32, #tpu.memory_space<vmem>>, vector<1x27x320xf32>
    %17 = vector.shape_cast %16 : vector<1x27x320xf32> to vector<27x320xf32>
    %cst_15 = arith.constant dense<0.000000e+00> : vector<8x320xf32>
    %18 = tpu.matmul %0, %17, %cst_15 {dimension_numbers = #tpu.dot_dimension_numbers<[1], [0], [0], [1], [0, 0, 1, 1], [], []>} : vector<8x27xf32>, vector<27x320xf32>, vector<8x320xf32> -> vector<8x320xf32>
    %19 = arith.maximumf %15, %18 : vector<8x320xf32>
    %c5 = arith.constant 5 : index
    %c0_16 = arith.constant 0 : index
    %c0_17 = arith.constant 0 : index
    %20 = vector.load %arg2[%c5, %c0_16, %c0_17] : memref<8x27x320xf32, #tpu.memory_space<vmem>>, vector<1x27x320xf32>
    %21 = vector.shape_cast %20 : vector<1x27x320xf32> to vector<27x320xf32>
    %cst_18 = arith.constant dense<0.000000e+00> : vector<8x320xf32>
    %22 = tpu.matmul %0, %21, %cst_18 {dimension_numbers = #tpu.dot_dimension_numbers<[1], [0], [0], [1], [0, 0, 1, 1], [], []>} : vector<8x27xf32>, vector<27x320xf32>, vector<8x320xf32> -> vector<8x320xf32>
    %23 = arith.maximumf %19, %22 : vector<8x320xf32>
    %c6 = arith.constant 6 : index
    %c0_19 = arith.constant 0 : index
    %c0_20 = arith.constant 0 : index
    %24 = vector.load %arg2[%c6, %c0_19, %c0_20] : memref<8x27x320xf32, #tpu.memory_space<vmem>>, vector<1x27x320xf32>
    %25 = vector.shape_cast %24 : vector<1x27x320xf32> to vector<27x320xf32>
    %cst_21 = arith.constant dense<0.000000e+00> : vector<8x320xf32>
    %26 = tpu.matmul %0, %25, %cst_21 {dimension_numbers = #tpu.dot_dimension_numbers<[1], [0], [0], [1], [0, 0, 1, 1], [], []>} : vector<8x27xf32>, vector<27x320xf32>, vector<8x320xf32> -> vector<8x320xf32>
    %27 = arith.maximumf %23, %26 : vector<8x320xf32>
    %c7 = arith.constant 7 : index
    %c0_22 = arith.constant 0 : index
    %c0_23 = arith.constant 0 : index
    %28 = vector.load %arg2[%c7, %c0_22, %c0_23] : memref<8x27x320xf32, #tpu.memory_space<vmem>>, vector<1x27x320xf32>
    %29 = vector.shape_cast %28 : vector<1x27x320xf32> to vector<27x320xf32>
    %cst_24 = arith.constant dense<0.000000e+00> : vector<8x320xf32>
    %30 = tpu.matmul %0, %29, %cst_24 {dimension_numbers = #tpu.dot_dimension_numbers<[1], [0], [0], [1], [0, 0, 1, 1], [], []>} : vector<8x27xf32>, vector<27x320xf32>, vector<8x320xf32> -> vector<8x320xf32>
    %31 = arith.maximumf %27, %30 : vector<8x320xf32>
    %c0_25 = arith.constant 0 : index
    %c0_26 = arith.constant 0 : index
    %32 = vector.load %arg3[%c0_25, %c0_26] : memref<8x1xf32, #tpu.memory_space<vmem>>, vector<8x1xf32>
    %33 = vector.broadcast %32 : vector<8x1xf32> to vector<8x320xf32>
    %34 = arith.addf %31, %33 : vector<8x320xf32>
    %cst_27 = arith.constant 0.000000e+00 : f32
    %35 = vector.broadcast %cst_27 : f32 to vector<8x320xf32>
    %36 = arith.maximumf %34, %35 : vector<8x320xf32>
    %c0_28 = arith.constant 0 : index
    %c0_29 = arith.constant 0 : index
    %37 = vector.load %arg4[%c0_28, %c0_29] : memref<8x320xf32, #tpu.memory_space<vmem>>, vector<8x320xf32>
    tpu.vector_store %arg4[%c0_28, %c0_29], %36 {strides = array<i32>} : memref<8x320xf32, #tpu.memory_space<vmem>>, vector<8x320xf32>,
    return
  }
  func.func @transform_0(%arg0: i32) -> (i32, i32) {
    %c0_i32 = arith.constant 0 : i32
    %c0_i32_0 = arith.constant 0 : i32
    %c0_i32_1 = arith.constant 0 : i32
    return %c0_i32, %c0_i32_0 : i32, i32
  }
  func.func @transform_1(%arg0: i32) -> (i32, i32, i32) {
    %c0_i32 = arith.constant 0 : i32
    %c0_i32_0 = arith.constant 0 : i32
    %c0_i32_1 = arith.constant 0 : i32
    return %c0_i32, %c0_i32_0, %arg0 : i32, i32, i32
  }
  func.func @transform_2(%arg0: i32) -> (i32, i32) {
    %c0_i32 = arith.constant 0 : i32
    %c0_i32_0 = arith.constant 0 : i32
    %c0_i32_1 = arith.constant 0 : i32
    return %c0_i32, %c0_i32_0 : i32, i32
  }
  func.func @transform_3(%arg0: i32) -> (i32, i32) {
    %c0_i32 = arith.constant 0 : i32
    %c0_i32_0 = arith.constant 0 : i32
    return %c0_i32, %arg0 : i32, i32
  }
}

module attributes {stable_mosaic.version = 11 : i64} {
  func.func @_conv_pool_kernel(%arg0: i32, %arg1: memref<16x216xf32, #tpu.memory_space<vmem>>, %arg2: memref<1x216x40xf32, #tpu.memory_space<vmem>>, %arg3: memref<16x1xf32, #tpu.memory_space<vmem>>, %arg4: memref<16x40xf32, #tpu.memory_space<vmem>>) attributes {dimension_semantics = [#tpu.dimension_semantics<parallel>], iteration_bounds = array<i64: 1>, scalar_prefetch = 0 : i64, scratch_operands = 0 : i64, tpu.core_type = #tpu.core_type<tc>, window_params = [{pipeline_mode = #tpu.pipeline_mode<synchronous>, transform_indices = @transform_0, window_bounds = array<i64: 16, 216>}, {transform_indices = @transform_1, window_bounds = array<i64: 1, 216, 40>}, {pipeline_mode = #tpu.pipeline_mode<synchronous>, transform_indices = @transform_2, window_bounds = array<i64: 16, 1>}, {transform_indices = @transform_3, window_bounds = array<i64: 16, 40>}]} {
    %c0 = arith.constant 0 : index
    %c0_0 = arith.constant 0 : index
    %0 = vector.load %arg1[%c0, %c0_0] : memref<16x216xf32, #tpu.memory_space<vmem>>, vector<16x216xf32>
    %c0_1 = arith.constant 0 : index
    %c0_2 = arith.constant 0 : index
    %c0_3 = arith.constant 0 : index
    %1 = vector.load %arg2[%c0_1, %c0_2, %c0_3] : memref<1x216x40xf32, #tpu.memory_space<vmem>>, vector<1x216x40xf32>
    %2 = vector.shape_cast %1 : vector<1x216x40xf32> to vector<216x40xf32>
    %cst = arith.constant dense<0.000000e+00> : vector<16x40xf32>
    %3 = tpu.matmul %0, %2, %cst {dimension_numbers = #tpu.dot_dimension_numbers<[1], [0], [0], [1], [0, 0, 1, 1], [], []>} : vector<16x216xf32>, vector<216x40xf32>, vector<16x40xf32> -> vector<16x40xf32>
    %c0_4 = arith.constant 0 : index
    %c0_5 = arith.constant 0 : index
    %4 = vector.load %arg3[%c0_4, %c0_5] : memref<16x1xf32, #tpu.memory_space<vmem>>, vector<16x1xf32>
    %5 = vector.broadcast %4 : vector<16x1xf32> to vector<16x40xf32>
    %6 = arith.addf %3, %5 : vector<16x40xf32>
    %cst_6 = arith.constant 0.000000e+00 : f32
    %7 = vector.broadcast %cst_6 : f32 to vector<16x40xf32>
    %8 = arith.maximumf %6, %7 : vector<16x40xf32>
    %c0_7 = arith.constant 0 : index
    %c0_8 = arith.constant 0 : index
    %9 = vector.load %arg4[%c0_7, %c0_8] : memref<16x40xf32, #tpu.memory_space<vmem>>, vector<16x40xf32>
    tpu.vector_store %arg4[%c0_7, %c0_8], %8 {strides = array<i32>} : memref<16x40xf32, #tpu.memory_space<vmem>>, vector<16x40xf32>,
    return
  }
  func.func @transform_0(%arg0: i32) -> (i32, i32) {
    %c0_i32 = arith.constant 0 : i32
    %c0_i32_0 = arith.constant 0 : i32
    %c0_i32_1 = arith.constant 0 : i32
    return %c0_i32, %c0_i32_0 : i32, i32
  }
  func.func @transform_1(%arg0: i32) -> (i32, i32, i32) {
    %c0_i32 = arith.constant 0 : i32
    %c0_i32_0 = arith.constant 0 : i32
    %c0_i32_1 = arith.constant 0 : i32
    return %c0_i32, %c0_i32_0, %arg0 : i32, i32, i32
  }
  func.func @transform_2(%arg0: i32) -> (i32, i32) {
    %c0_i32 = arith.constant 0 : i32
    %c0_i32_0 = arith.constant 0 : i32
    %c0_i32_1 = arith.constant 0 : i32
    return %c0_i32, %c0_i32_0 : i32, i32
  }
  func.func @transform_3(%arg0: i32) -> (i32, i32) {
    %c0_i32 = arith.constant 0 : i32
    %c0_i32_0 = arith.constant 0 : i32
    return %c0_i32, %arg0 : i32, i32
  }
}

module attributes {stable_mosaic.version = 11 : i64} {
  func.func @_conv_pool_kernel(%arg0: i32, %arg1: memref<16x432xf32, #tpu.memory_space<vmem>>, %arg2: memref<4x432x4xf32, #tpu.memory_space<vmem>>, %arg3: memref<16x1xf32, #tpu.memory_space<vmem>>, %arg4: memref<16x4xf32, #tpu.memory_space<vmem>>) attributes {dimension_semantics = [#tpu.dimension_semantics<parallel>], iteration_bounds = array<i64: 1>, scalar_prefetch = 0 : i64, scratch_operands = 0 : i64, tpu.core_type = #tpu.core_type<tc>, window_params = [{pipeline_mode = #tpu.pipeline_mode<synchronous>, transform_indices = @transform_0, window_bounds = array<i64: 16, 432>}, {transform_indices = @transform_1, window_bounds = array<i64: 4, 432, 4>}, {pipeline_mode = #tpu.pipeline_mode<synchronous>, transform_indices = @transform_2, window_bounds = array<i64: 16, 1>}, {transform_indices = @transform_3, window_bounds = array<i64: 16, 4>}]} {
    %c0 = arith.constant 0 : index
    %c0_0 = arith.constant 0 : index
    %0 = vector.load %arg1[%c0, %c0_0] : memref<16x432xf32, #tpu.memory_space<vmem>>, vector<16x432xf32>
    %c0_1 = arith.constant 0 : index
    %c0_2 = arith.constant 0 : index
    %c0_3 = arith.constant 0 : index
    %1 = vector.load %arg2[%c0_1, %c0_2, %c0_3] : memref<4x432x4xf32, #tpu.memory_space<vmem>>, vector<1x432x4xf32>
    %2 = vector.shape_cast %1 : vector<1x432x4xf32> to vector<432x4xf32>
    %cst = arith.constant dense<0.000000e+00> : vector<16x4xf32>
    %3 = tpu.matmul %0, %2, %cst {dimension_numbers = #tpu.dot_dimension_numbers<[1], [0], [0], [1], [0, 0, 1, 1], [], []>} : vector<16x432xf32>, vector<432x4xf32>, vector<16x4xf32> -> vector<16x4xf32>
    %c1 = arith.constant 1 : index
    %c0_4 = arith.constant 0 : index
    %c0_5 = arith.constant 0 : index
    %4 = vector.load %arg2[%c1, %c0_4, %c0_5] : memref<4x432x4xf32, #tpu.memory_space<vmem>>, vector<1x432x4xf32>
    %5 = vector.shape_cast %4 : vector<1x432x4xf32> to vector<432x4xf32>
    %cst_6 = arith.constant dense<0.000000e+00> : vector<16x4xf32>
    %6 = tpu.matmul %0, %5, %cst_6 {dimension_numbers = #tpu.dot_dimension_numbers<[1], [0], [0], [1], [0, 0, 1, 1], [], []>} : vector<16x432xf32>, vector<432x4xf32>, vector<16x4xf32> -> vector<16x4xf32>
    %7 = arith.maximumf %3, %6 : vector<16x4xf32>
    %c2 = arith.constant 2 : index
    %c0_7 = arith.constant 0 : index
    %c0_8 = arith.constant 0 : index
    %8 = vector.load %arg2[%c2, %c0_7, %c0_8] : memref<4x432x4xf32, #tpu.memory_space<vmem>>, vector<1x432x4xf32>
    %9 = vector.shape_cast %8 : vector<1x432x4xf32> to vector<432x4xf32>
    %cst_9 = arith.constant dense<0.000000e+00> : vector<16x4xf32>
    %10 = tpu.matmul %0, %9, %cst_9 {dimension_numbers = #tpu.dot_dimension_numbers<[1], [0], [0], [1], [0, 0, 1, 1], [], []>} : vector<16x432xf32>, vector<432x4xf32>, vector<16x4xf32> -> vector<16x4xf32>
    %11 = arith.maximumf %7, %10 : vector<16x4xf32>
    %c3 = arith.constant 3 : index
    %c0_10 = arith.constant 0 : index
    %c0_11 = arith.constant 0 : index
    %12 = vector.load %arg2[%c3, %c0_10, %c0_11] : memref<4x432x4xf32, #tpu.memory_space<vmem>>, vector<1x432x4xf32>
    %13 = vector.shape_cast %12 : vector<1x432x4xf32> to vector<432x4xf32>
    %cst_12 = arith.constant dense<0.000000e+00> : vector<16x4xf32>
    %14 = tpu.matmul %0, %13, %cst_12 {dimension_numbers = #tpu.dot_dimension_numbers<[1], [0], [0], [1], [0, 0, 1, 1], [], []>} : vector<16x432xf32>, vector<432x4xf32>, vector<16x4xf32> -> vector<16x4xf32>
    %15 = arith.maximumf %11, %14 : vector<16x4xf32>
    %c0_13 = arith.constant 0 : index
    %c0_14 = arith.constant 0 : index
    %16 = vector.load %arg3[%c0_13, %c0_14] : memref<16x1xf32, #tpu.memory_space<vmem>>, vector<16x1xf32>
    %17 = vector.broadcast %16 : vector<16x1xf32> to vector<16x4xf32>
    %18 = arith.addf %15, %17 : vector<16x4xf32>
    %cst_15 = arith.constant 0.000000e+00 : f32
    %19 = vector.broadcast %cst_15 : f32 to vector<16x4xf32>
    %20 = arith.maximumf %18, %19 : vector<16x4xf32>
    %c0_16 = arith.constant 0 : index
    %c0_17 = arith.constant 0 : index
    %21 = vector.load %arg4[%c0_16, %c0_17] : memref<16x4xf32, #tpu.memory_space<vmem>>, vector<16x4xf32>
    tpu.vector_store %arg4[%c0_16, %c0_17], %20 {strides = array<i32>} : memref<16x4xf32, #tpu.memory_space<vmem>>, vector<16x4xf32>,
    return
  }
  func.func @transform_0(%arg0: i32) -> (i32, i32) {
    %c0_i32 = arith.constant 0 : i32
    %c0_i32_0 = arith.constant 0 : i32
    %c0_i32_1 = arith.constant 0 : i32
    return %c0_i32, %c0_i32_0 : i32, i32
  }
  func.func @transform_1(%arg0: i32) -> (i32, i32, i32) {
    %c0_i32 = arith.constant 0 : i32
    %c0_i32_0 = arith.constant 0 : i32
    %c0_i32_1 = arith.constant 0 : i32
    return %c0_i32, %c0_i32_0, %arg0 : i32, i32, i32
  }
  func.func @transform_2(%arg0: i32) -> (i32, i32) {
    %c0_i32 = arith.constant 0 : i32
    %c0_i32_0 = arith.constant 0 : i32
    %c0_i32_1 = arith.constant 0 : i32
    return %c0_i32, %c0_i32_0 : i32, i32
  }
  func.func @transform_3(%arg0: i32) -> (i32, i32) {
    %c0_i32 = arith.constant 0 : i32
    %c0_i32_0 = arith.constant 0 : i32
    return %c0_i32, %arg0 : i32, i32
  }
}

module attributes {stable_mosaic.version = 11 : i64} {
  func.func @_conv_pool_kernel(%arg0: i32, %arg1: memref<16x432xf32, #tpu.memory_space<vmem>>, %arg2: memref<1x432x2xf32, #tpu.memory_space<vmem>>, %arg3: memref<16x1xf32, #tpu.memory_space<vmem>>, %arg4: memref<16x2xf32, #tpu.memory_space<vmem>>) attributes {dimension_semantics = [#tpu.dimension_semantics<parallel>], iteration_bounds = array<i64: 1>, scalar_prefetch = 0 : i64, scratch_operands = 0 : i64, tpu.core_type = #tpu.core_type<tc>, window_params = [{pipeline_mode = #tpu.pipeline_mode<synchronous>, transform_indices = @transform_0, window_bounds = array<i64: 16, 432>}, {transform_indices = @transform_1, window_bounds = array<i64: 1, 432, 2>}, {pipeline_mode = #tpu.pipeline_mode<synchronous>, transform_indices = @transform_2, window_bounds = array<i64: 16, 1>}, {transform_indices = @transform_3, window_bounds = array<i64: 16, 2>}]} {
    %c0 = arith.constant 0 : index
    %c0_0 = arith.constant 0 : index
    %0 = vector.load %arg1[%c0, %c0_0] : memref<16x432xf32, #tpu.memory_space<vmem>>, vector<16x432xf32>
    %c0_1 = arith.constant 0 : index
    %c0_2 = arith.constant 0 : index
    %c0_3 = arith.constant 0 : index
    %1 = vector.load %arg2[%c0_1, %c0_2, %c0_3] : memref<1x432x2xf32, #tpu.memory_space<vmem>>, vector<1x432x2xf32>
    %2 = vector.shape_cast %1 : vector<1x432x2xf32> to vector<432x2xf32>
    %cst = arith.constant dense<0.000000e+00> : vector<16x2xf32>
    %3 = tpu.matmul %0, %2, %cst {dimension_numbers = #tpu.dot_dimension_numbers<[1], [0], [0], [1], [0, 0, 1, 1], [], []>} : vector<16x432xf32>, vector<432x2xf32>, vector<16x2xf32> -> vector<16x2xf32>
    %c0_4 = arith.constant 0 : index
    %c0_5 = arith.constant 0 : index
    %4 = vector.load %arg3[%c0_4, %c0_5] : memref<16x1xf32, #tpu.memory_space<vmem>>, vector<16x1xf32>
    %5 = vector.broadcast %4 : vector<16x1xf32> to vector<16x2xf32>
    %6 = arith.addf %3, %5 : vector<16x2xf32>
    %cst_6 = arith.constant 0.000000e+00 : f32
    %7 = vector.broadcast %cst_6 : f32 to vector<16x2xf32>
    %8 = arith.maximumf %6, %7 : vector<16x2xf32>
    %c0_7 = arith.constant 0 : index
    %c0_8 = arith.constant 0 : index
    %9 = vector.load %arg4[%c0_7, %c0_8] : memref<16x2xf32, #tpu.memory_space<vmem>>, vector<16x2xf32>
    tpu.vector_store %arg4[%c0_7, %c0_8], %8 {strides = array<i32>} : memref<16x2xf32, #tpu.memory_space<vmem>>, vector<16x2xf32>,
    return
  }
  func.func @transform_0(%arg0: i32) -> (i32, i32) {
    %c0_i32 = arith.constant 0 : i32
    %c0_i32_0 = arith.constant 0 : i32
    %c0_i32_1 = arith.constant 0 : i32
    return %c0_i32, %c0_i32_0 : i32, i32
  }
  func.func @transform_1(%arg0: i32) -> (i32, i32, i32) {
    %c0_i32 = arith.constant 0 : i32
    %c0_i32_0 = arith.constant 0 : i32
    %c0_i32_1 = arith.constant 0 : i32
    return %c0_i32, %c0_i32_0, %arg0 : i32, i32, i32
  }
  func.func @transform_2(%arg0: i32) -> (i32, i32) {
    %c0_i32 = arith.constant 0 : i32
    %c0_i32_0 = arith.constant 0 : i32
    %c0_i32_1 = arith.constant 0 : i32
    return %c0_i32, %c0_i32_0 : i32, i32
  }
  func.func @transform_3(%arg0: i32) -> (i32, i32) {
    %c0_i32 = arith.constant 0 : i32
    %c0_i32_0 = arith.constant 0 : i32
    return %c0_i32, %arg0 : i32, i32
  }
}

module attributes {stable_mosaic.version = 11 : i64} {
  func.func @_fc_fused_kernel(%arg0: i32, %arg1: memref<8x16xf32, #tpu.memory_space<vmem>>, %arg2: memref<16x128xf32, #tpu.memory_space<vmem>>, %arg3: memref<1x128xf32, #tpu.memory_space<vmem>>, %arg4: memref<128x128xf32, #tpu.memory_space<vmem>>, %arg5: memref<1x128xf32, #tpu.memory_space<vmem>>, %arg6: memref<128x128xf32, #tpu.memory_space<vmem>>, %arg7: memref<1x128xf32, #tpu.memory_space<vmem>>, %arg8: memref<8x128xf32, #tpu.memory_space<vmem>>) attributes {dimension_semantics = [#tpu.dimension_semantics<arbitrary>], iteration_bounds = array<i64: 1>, scalar_prefetch = 0 : i64, scratch_operands = 0 : i64, tpu.core_type = #tpu.core_type<tc>, window_params = [{pipeline_mode = #tpu.pipeline_mode<synchronous>, transform_indices = @transform_0, window_bounds = array<i64: 8, 16>}, {pipeline_mode = #tpu.pipeline_mode<synchronous>, transform_indices = @transform_1, window_bounds = array<i64: 16, 128>}, {pipeline_mode = #tpu.pipeline_mode<synchronous>, transform_indices = @transform_2, window_bounds = array<i64: 1, 128>}, {pipeline_mode = #tpu.pipeline_mode<synchronous>, transform_indices = @transform_3, window_bounds = array<i64: 128, 128>}, {pipeline_mode = #tpu.pipeline_mode<synchronous>, transform_indices = @transform_4, window_bounds = array<i64: 1, 128>}, {pipeline_mode = #tpu.pipeline_mode<synchronous>, transform_indices = @transform_5, window_bounds = array<i64: 128, 128>}, {pipeline_mode = #tpu.pipeline_mode<synchronous>, transform_indices = @transform_6, window_bounds = array<i64: 1, 128>}, {pipeline_mode = #tpu.pipeline_mode<synchronous>, transform_indices = @transform_7, window_bounds = array<i64: 8, 128>}]} {
    %c0 = arith.constant 0 : index
    %c0_0 = arith.constant 0 : index
    %0 = vector.load %arg1[%c0, %c0_0] : memref<8x16xf32, #tpu.memory_space<vmem>>, vector<8x16xf32>
    %c0_1 = arith.constant 0 : index
    %c0_2 = arith.constant 0 : index
    %1 = vector.load %arg2[%c0_1, %c0_2] : memref<16x128xf32, #tpu.memory_space<vmem>>, vector<16x128xf32>
    %cst = arith.constant dense<0.000000e+00> : vector<8x128xf32>
    %2 = tpu.matmul %0, %1, %cst {dimension_numbers = #tpu.dot_dimension_numbers<[1], [0], [0], [1], [0, 0, 1, 1], [], []>} : vector<8x16xf32>, vector<16x128xf32>, vector<8x128xf32> -> vector<8x128xf32>
    %c0_3 = arith.constant 0 : index
    %c0_4 = arith.constant 0 : index
    %3 = vector.load %arg3[%c0_3, %c0_4] : memref<1x128xf32, #tpu.memory_space<vmem>>, vector<1x128xf32>
    %4 = vector.broadcast %3 : vector<1x128xf32> to vector<8x128xf32>
    %5 = arith.addf %2, %4 : vector<8x128xf32>
    %cst_5 = arith.constant 0.000000e+00 : f32
    %6 = vector.broadcast %cst_5 : f32 to vector<8x128xf32>
    %7 = arith.maximumf %5, %6 : vector<8x128xf32>
    %c0_6 = arith.constant 0 : index
    %c0_7 = arith.constant 0 : index
    %8 = vector.load %arg4[%c0_6, %c0_7] : memref<128x128xf32, #tpu.memory_space<vmem>>, vector<128x128xf32>
    %cst_8 = arith.constant dense<0.000000e+00> : vector<8x128xf32>
    %9 = tpu.matmul %7, %8, %cst_8 {dimension_numbers = #tpu.dot_dimension_numbers<[1], [0], [0], [1], [0, 0, 1, 1], [], []>} : vector<8x128xf32>, vector<128x128xf32>, vector<8x128xf32> -> vector<8x128xf32>
    %c0_9 = arith.constant 0 : index
    %c0_10 = arith.constant 0 : index
    %10 = vector.load %arg5[%c0_9, %c0_10] : memref<1x128xf32, #tpu.memory_space<vmem>>, vector<1x128xf32>
    %11 = vector.broadcast %10 : vector<1x128xf32> to vector<8x128xf32>
    %12 = arith.addf %9, %11 : vector<8x128xf32>
    %cst_11 = arith.constant 0.000000e+00 : f32
    %13 = vector.broadcast %cst_11 : f32 to vector<8x128xf32>
    %14 = arith.maximumf %12, %13 : vector<8x128xf32>
    %c0_12 = arith.constant 0 : index
    %c0_13 = arith.constant 0 : index
    %15 = vector.load %arg6[%c0_12, %c0_13] : memref<128x128xf32, #tpu.memory_space<vmem>>, vector<128x128xf32>
    %cst_14 = arith.constant dense<0.000000e+00> : vector<8x128xf32>
    %16 = tpu.matmul %14, %15, %cst_14 {dimension_numbers = #tpu.dot_dimension_numbers<[1], [0], [0], [1], [0, 0, 1, 1], [], []>} : vector<8x128xf32>, vector<128x128xf32>, vector<8x128xf32> -> vector<8x128xf32>
    %c0_15 = arith.constant 0 : index
    %c0_16 = arith.constant 0 : index
    %17 = vector.load %arg7[%c0_15, %c0_16] : memref<1x128xf32, #tpu.memory_space<vmem>>, vector<1x128xf32>
    %18 = vector.broadcast %17 : vector<1x128xf32> to vector<8x128xf32>
    %19 = arith.addf %16, %18 : vector<8x128xf32>
    %20 = arith.negf %19 : vector<8x128xf32>
    %21 = math.exp %20 : vector<8x128xf32>
    %cst_17 = arith.constant 1.000000e+00 : f32
    %22 = vector.broadcast %cst_17 : f32 to vector<8x128xf32>
    %23 = arith.addf %22, %21 : vector<8x128xf32>
    %24 = arith.divf %22, %23 : vector<8x128xf32>
    %c0_18 = arith.constant 0 : index
    %c0_19 = arith.constant 0 : index
    %25 = vector.load %arg8[%c0_18, %c0_19] : memref<8x128xf32, #tpu.memory_space<vmem>>, vector<8x128xf32>
    tpu.vector_store %arg8[%c0_18, %c0_19], %24 {strides = array<i32>} : memref<8x128xf32, #tpu.memory_space<vmem>>, vector<8x128xf32>,
    return
  }
  func.func @transform_0(%arg0: i32) -> (i32, i32) {
    %c0_i32 = arith.constant 0 : i32
    %c0_i32_0 = arith.constant 0 : i32
    %c0_i32_1 = arith.constant 0 : i32
    return %c0_i32, %c0_i32_0 : i32, i32
  }
  func.func @transform_1(%arg0: i32) -> (i32, i32) {
    %c0_i32 = arith.constant 0 : i32
    %c0_i32_0 = arith.constant 0 : i32
    %c0_i32_1 = arith.constant 0 : i32
    return %c0_i32, %c0_i32_0 : i32, i32
  }
  func.func @transform_2(%arg0: i32) -> (i32, i32) {
    %c0_i32 = arith.constant 0 : i32
    %c0_i32_0 = arith.constant 0 : i32
    %c0_i32_1 = arith.constant 0 : i32
    return %c0_i32, %c0_i32_0 : i32, i32
  }
  func.func @transform_3(%arg0: i32) -> (i32, i32) {
    %c0_i32 = arith.constant 0 : i32
    %c0_i32_0 = arith.constant 0 : i32
    %c0_i32_1 = arith.constant 0 : i32
    return %c0_i32, %c0_i32_0 : i32, i32
  }
  func.func @transform_4(%arg0: i32) -> (i32, i32) {
    %c0_i32 = arith.constant 0 : i32
    %c0_i32_0 = arith.constant 0 : i32
    %c0_i32_1 = arith.constant 0 : i32
    return %c0_i32, %c0_i32_0 : i32, i32
  }
  func.func @transform_5(%arg0: i32) -> (i32, i32) {
    %c0_i32 = arith.constant 0 : i32
    %c0_i32_0 = arith.constant 0 : i32
    %c0_i32_1 = arith.constant 0 : i32
    return %c0_i32, %c0_i32_0 : i32, i32
  }
  func.func @transform_6(%arg0: i32) -> (i32, i32) {
    %c0_i32 = arith.constant 0 : i32
    %c0_i32_0 = arith.constant 0 : i32
    %c0_i32_1 = arith.constant 0 : i32
    return %c0_i32, %c0_i32_0 : i32, i32
  }
  func.func @transform_7(%arg0: i32) -> (i32, i32) {
    %c0_i32 = arith.constant 0 : i32
    %c0_i32_0 = arith.constant 0 : i32
    %c0_i32_1 = arith.constant 0 : i32
    return %c0_i32, %c0_i32_0 : i32, i32
  }
}

</mosaic_0001>

<llo_original>
// kernel: discriminator_forward.5
$region0: #{discriminator_forward.5}
  #allocation0 [shape = 'u32[]', space=smem, size = 0x4, offset = 0x4, fixed_abs, tag = 'smem constant byte address 0x4 - core index']
  #allocation1 [shape = 'u32[72,128]{1,0:T(1,128)}', space=vmem, size = 0x9000, scoped, tag = 'internal scratch']
  %s0 = inlined_call_operand.vmem [shape: f32[8,27], index: 0, kind: input, shape index: {}]
  %s1 = inlined_call_operand.vmem [shape: f32[8,27,320], index: 1, kind: input, shape index: {}]
  %s2 = inlined_call_operand.vmem [shape: f32[8,1], index: 2, kind: input, shape index: {}]
  %s3 = inlined_call_operand.vmem [shape: f32[8,320], index: 3, kind: output, shape index: {}]
  %s4 = sld [smem:[#allocation0]]
  $region22: #{discriminator_forward.5} parent=0
    _
  %s6 = ssub.s32 1, %s4
  %s7 = scalar_select 0, %s6, %s4
  // Predicated region
  $region2: #{discriminator_forward.5} parent=0 // pred_check
    _
  $region3: #{discriminator_forward.5} parent=0 // pred_check_branch
    %9 = sbr.rel (0) target = $region5
  $region4: #{discriminator_forward.5} parent=0 // pred_region
    _
  $region5: #{discriminator_forward.5} parent=0 // pred_fallthru
    _
  // Predicated region
  $region6: #{discriminator_forward.5} parent=0 // pred_check
    _
  $region7: #{discriminator_forward.5} parent=0 // pred_check_branch
    %11 = sbr.rel (0) target = $region9
  $region8: #{discriminator_forward.5} parent=0 // pred_region
    _
  $region9: #{discriminator_forward.5} parent=0 // pred_fallthru
    _
  // Predicated region
  $region10: #{discriminator_forward.5} parent=0 // pred_check
    _
  $region11: #{discriminator_forward.5} parent=0 // pred_check_branch
    %13 = sbr.rel (0) target = $region13
  $region12: #{discriminator_forward.5} parent=0 // pred_region
    _
  $region13: #{discriminator_forward.5} parent=0 // pred_fallthru
    _
  %v14 = vld [vmem:[%s0] sm:$0xff]
  %v15 = vld [vmem:[%s1] sm:$0xff]
  %v16 = vld [vmem:[%s1 + $0x8] sm:$0xff]
  %v17 = vld [vmem:[%s1 + $0x10] sm:$0xff]
  %v18 = vld [vmem:[%s1 + $0x18] sm:$0xff]
  %v19 = vld [vmem:[%s1 + $0x20] sm:$0xff]
  %v20 = vld [vmem:[%s1 + $0x28] sm:$0xff]
  %v21 = vld [vmem:[%s1 + $0x30] sm:$0xff]
  %v22 = vld [vmem:[%s1 + $0x38] sm:$0xff]
  %v23 = vld [vmem:[%s1 + $0x40] sm:$0xff]
  %v24 = vld [vmem:[%s1 + $0x48] sm:$0x7]
  %v25 = vld [vmem:[%s1 + $0x50] sm:$0x7]
  %v26 = vld [vmem:[%s1 + $0x58] sm:$0x7]
  %vm27 = vcmask 220160
  %v29 = vsel %vm27, %v14, 0
  %vm31 = vcmask 1042432
  %v33 = vsel %vm31, %v24, 0
  %v36 = vsel %vm31, %v25, 0
  %v39 = vsel %vm31, %v26, 0
  %41 = vmatpush.msra.mxu0 0.0
  %42 = vmatpush.msra.mxu0 0.0
  %43 = vmatpush.msra.mxu0 0.0
  %44 = vmatpush.msra.mxu0 0.0
  %45 = vmatpush.msra.mxu0 0.0
  %46 = vmatpush.msra.mxu0 0.0
  %47 = vmatpush.msra.mxu0 0.0
  %48 = vmatpush.msra.mxu0 0.0
  %49 = vmatpush.msra.mxu0 0.0
  %50 = vmatpush.msra.mxu0 0.0
  %51 = vmatpush.msra.mxu0 0.0
  %52 = vmatpush.msra.mxu0 0.0
  %53 = vmatpush.msra.mxu0 %v33
  %54 = vmatpush.msra.mxu0 %v21
  %55 = vmatpush.msra.mxu0 %v18
  %56 = vmatpush.msra.mxu0 %v15
  %57 = vmatmul.f32.gmra.mxu0 %v29
  %v58 = vpop.f32.mrf.mxu0
  %v59 = vadd.f32 0.0, %v58
  %60 = vdwg.mxu0
  %61 = vmatpush.msra.mxu0 0.0
  %62 = vmatpush.msra.mxu0 0.0
  %63 = vmatpush.msra.mxu0 0.0
  %64 = vmatpush.msra.mxu0 0.0
  %65 = vmatpush.msra.mxu0 0.0
  %66 = vmatpush.msra.mxu0 0.0
  %67 = vmatpush.msra.mxu0 0.0
  %68 = vmatpush.msra.mxu0 0.0
  %69 = vmatpush.msra.mxu0 0.0
  %70 = vmatpush.msra.mxu0 0.0
  %71 = vmatpush.msra.mxu0 0.0
  %72 = vmatpush.msra.mxu0 0.0
  %73 = vmatpush.msra.mxu0 %v36
  %74 = vmatpush.msra.mxu0 %v22
  %75 = vmatpush.msra.mxu0 %v19
  %76 = vmatpush.msra.mxu0 %v16
  %77 = vmatmul.f32.gmra.mxu0 %v29
  %v78 = vpop.f32.mrf.mxu0
  %v79 = vadd.f32 0.0, %v78
  %80 = vdwg.mxu0
  %81 = vmatpush.msra.mxu0 0.0
  %82 = vmatpush.msra.mxu0 0.0
  %83 = vmatpush.msra.mxu0 0.0
  %84 = vmatpush.msra.mxu0 0.0
  %85 = vmatpush.msra.mxu0 0.0
  %86 = vmatpush.msra.mxu0 0.0
  %87 = vmatpush.msra.mxu0 0.0
  %88 = vmatpush.msra.mxu0 0.0
  %89 = vmatpush.msra.mxu0 0.0
  %90 = vmatpush.msra.mxu0 0.0
  %91 = vmatpush.msra.mxu0 0.0
  %92 = vmatpush.msra.mxu0 0.0
  %93 = vmatpush.msra.mxu0 %v39
  %94 = vmatpush.msra.mxu0 %v23
  %95 = vmatpush.msra.mxu0 %v20
  %96 = vmatpush.msra.mxu0 %v17
  %97 = vmatmul.f32.gmra.mxu0 %v29
  %v98 = vpop.f32.mrf.mxu0
  %v99 = vadd.f32 0.0, %v98
  %100 = vdwg.mxu0
  %s101 = scalar_lea.vmem %s1, 96
  %v102 = vld [vmem:[%s101] sm:$0xff]
  %v103 = vld [vmem:[%s101 + $0x8] sm:$0xff]
  %v104 = vld [vmem:[%s101 + $0x10] sm:$0xff]
  %v105 = vld [vmem:[%s101 + $0x18] sm:$0xff]
  %v106 = vld [vmem:[%s101 + $0x20] sm:$0xff]
  %v107 = vld [vmem:[%s101 + $0x28] sm:$0xff]
  %v108 = vld [vmem:[%s101 + $0x30] sm:$0xff]
  %v109 = vld [vmem:[%s101 + $0x38] sm:$0xff]
  %v110 = vld [vmem:[%s101 + $0x40] sm:$0xff]
  %v111 = vld [vmem:[%s101 + $0x48] sm:$0x7]
  %v112 = vld [vmem:[%s101 + $0x50] sm:$0x7]
  %v113 = vld [vmem:[%s101 + $0x58] sm:$0x7]
  %v115 = vsel %vm31, %v111, 0
  %v118 = vsel %vm31, %v112, 0
  %v121 = vsel %vm31, %v113, 0
  %123 = vmatpush.msra.mxu0 0.0
  %124 = vmatpush.msra.mxu0 0.0
  %125 = vmatpush.msra.mxu0 0.0
  %126 = vmatpush.msra.mxu0 0.0
  %127 = vmatpush.msra.mxu0 0.0
  %128 = vmatpush.msra.mxu0 0.0
  %129 = vmatpush.msra.mxu0 0.0
  %130 = vmatpush.msra.mxu0 0.0
  %131 = vmatpush.msra.mxu0 0.0
  %132 = vmatpush.msra.mxu0 0.0
  %133 = vmatpush.msra.mxu0 0.0
  %134 = vmatpush.msra.mxu0 0.0
  %135 = vmatpush.msra.mxu0 %v115
  %136 = vmatpush.msra.mxu0 %v108
  %137 = vmatpush.msra.mxu0 %v105
  %138 = vmatpush.msra.mxu0 %v102
  %139 = vmatmul.f32.gmra.mxu0 %v29
  %v140 = vpop.f32.mrf.mxu0
  %v141 = vadd.f32 0.0, %v140
  %142 = vdwg.mxu0
  %143 = vmatpush.msra.mxu0 0.0
  %144 = vmatpush.msra.mxu0 0.0
  %145 = vmatpush.msra.mxu0 0.0
  %146 = vmatpush.msra.mxu0 0.0
  %147 = vmatpush.msra.mxu0 0.0
  %148 = vmatpush.msra.mxu0 0.0
  %149 = vmatpush.msra.mxu0 0.0
  %150 = vmatpush.msra.mxu0 0.0
  %151 = vmatpush.msra.mxu0 0.0
  %152 = vmatpush.msra.mxu0 0.0
  %153 = vmatpush.msra.mxu0 0.0
  %154 = vmatpush.msra.mxu0 0.0
  %155 = vmatpush.msra.mxu0 %v118
  %156 = vmatpush.msra.mxu0 %v109
  %157 = vmatpush.msra.mxu0 %v106
  %158 = vmatpush.msra.mxu0 %v103
  %159 = vmatmul.f32.gmra.mxu0 %v29
  %v160 = vpop.f32.mrf.mxu0
  %v161 = vadd.f32 0.0, %v160
  %162 = vdwg.mxu0
  %163 = vmatpush.msra.mxu0 0.0
  %164 = vmatpush.msra.mxu0 0.0
  %165 = vmatpush.msra.mxu0 0.0
  %166 = vmatpush.msra.mxu0 0.0
  %167 = vmatpush.msra.mxu0 0.0
  %168 = vmatpush.msra.mxu0 0.0
  %169 = vmatpush.msra.mxu0 0.0
  %170 = vmatpush.msra.mxu0 0.0
  %171 = vmatpush.msra.mxu0 0.0
  %172 = vmatpush.msra.mxu0 0.0
  %173 = vmatpush.msra.mxu0 0.0
  %174 = vmatpush.msra.mxu0 0.0
  %175 = vmatpush.msra.mxu0 %v121
  %176 = vmatpush.msra.mxu0 %v110
  %177 = vmatpush.msra.mxu0 %v107
  %178 = vmatpush.msra.mxu0 %v104
  %179 = vmatmul.f32.gmra.mxu0 %v29
  %v180 = vpop.f32.mrf.mxu0
  %v181 = vadd.f32 0.0, %v180
  %182 = vdwg.mxu0
  %v183 = vmax.f32 %v59, %v141
  %v184 = vmax.f32 %v79, %v161
  %v185 = vmax.f32 %v99, %v181
  %s186 = scalar_lea.vmem %s1, 192
  %v187 = vld [vmem:[%s186] sm:$0xff]
  %v188 = vld [vmem:[%s186 + $0x8] sm:$0xff]
  %v189 = vld [vmem:[%s186 + $0x10] sm:$0xff]
  %v190 = vld [vmem:[%s186 + $0x18] sm:$0xff]
  %v191 = vld [vmem:[%s186 + $0x20] sm:$0xff]
  %v192 = vld [vmem:[%s186 + $0x28] sm:$0xff]
  %v193 = vld [vmem:[%s186 + $0x30] sm:$0xff]
  %v194 = vld [vmem:[%s186 + $0x38] sm:$0xff]
  %v195 = vld [vmem:[%s186 + $0x40] sm:$0xff]
  %v196 = vld [vmem:[%s186 + $0x48] sm:$0x7]
  %v197 = vld [vmem:[%s186 + $0x50] sm:$0x7]
  %v198 = vld [vmem:[%s186 + $0x58] sm:$0x7]
  %v200 = vsel %vm31, %v196, 0
  %v203 = vsel %vm31, %v197, 0
  %v206 = vsel %vm31, %v198, 0
  %208 = vmatpush.msra.mxu0 0.0
  %209 = vmatpush.msra.mxu0 0.0
  %210 = vmatpush.msra.mxu0 0.0
  %211 = vmatpush.msra.mxu0 0.0
  %212 = vmatpush.msra.mxu0 0.0
  %213 = vmatpush.msra.mxu0 0.0
  %214 = vmatpush.msra.mxu0 0.0
  %215 = vmatpush.msra.mxu0 0.0
  %216 = vmatpush.msra.mxu0 0.0
  %217 = vmatpush.msra.mxu0 0.0
  %218 = vmatpush.msra.mxu0 0.0
  %219 = vmatpush.msra.mxu0 0.0
  %220 = vmatpush.msra.mxu0 %v200
  %221 = vmatpush.msra.mxu0 %v193
  %222 = vmatpush.msra.mxu0 %v190
  %223 = vmatpush.msra.mxu0 %v187
  %224 = vmatmul.f32.gmra.mxu0 %v29
  %v225 = vpop.f32.mrf.mxu0
  %v226 = vadd.f32 0.0, %v225
  %227 = vdwg.mxu0
  %228 = vmatpush.msra.mxu0 0.0
  %229 = vmatpush.msra.mxu0 0.0
  %230 = vmatpush.msra.mxu0 0.0
  %231 = vmatpush.msra.mxu0 0.0
  %232 = vmatpush.msra.mxu0 0.0
  %233 = vmatpush.msra.mxu0 0.0
  %234 = vmatpush.msra.mxu0 0.0
  %235 = vmatpush.msra.mxu0 0.0
  %236 = vmatpush.msra.mxu0 0.0
  %237 = vmatpush.msra.mxu0 0.0
  %238 = vmatpush.msra.mxu0 0.0
  %239 = vmatpush.msra.mxu0 0.0
  %240 = vmatpush.msra.mxu0 %v203
  %241 = vmatpush.msra.mxu0 %v194
  %242 = vmatpush.msra.mxu0 %v191
  %243 = vmatpush.msra.mxu0 %v188
  %244 = vmatmul.f32.gmra.mxu0 %v29
  %v245 = vpop.f32.mrf.mxu0
  %v246 = vadd.f32 0.0, %v245
  %247 = vdwg.mxu0
  %248 = vmatpush.msra.mxu0 0.0
  %249 = vmatpush.msra.mxu0 0.0
  %250 = vmatpush.msra.mxu0 0.0
  %251 = vmatpush.msra.mxu0 0.0
  %252 = vmatpush.msra.mxu0 0.0
  %253 = vmatpush.msra.mxu0 0.0
  %254 = vmatpush.msra.mxu0 0.0
  %255 = vmatpush.msra.mxu0 0.0
  %256 = vmatpush.msra.mxu0 0.0
  %257 = vmatpush.msra.mxu0 0.0
  %258 = vmatpush.msra.mxu0 0.0
  %259 = vmatpush.msra.mxu0 0.0
  %260 = vmatpush.msra.mxu0 %v206
  %261 = vmatpush.msra.mxu0 %v195
  %262 = vmatpush.msra.mxu0 %v192
  %263 = vmatpush.msra.mxu0 %v189
  %264 = vmatmul.f32.gmra.mxu0 %v29
  %v265 = vpop.f32.mrf.mxu0
  %v266 = vadd.f32 0.0, %v265
  %267 = vdwg.mxu0
  %v268 = vmax.f32 %v183, %v226
  %v269 = vmax.f32 %v184, %v246
  %v270 = vmax.f32 %v185, %v266
  %s271 = scalar_lea.vmem %s1, 288
  %v272 = vld [vmem:[%s271] sm:$0xff]
  %v273 = vld [vmem:[%s271 + $0x8] sm:$0xff]
  %v274 = vld [vmem:[%s271 + $0x10] sm:$0xff]
  %v275 = vld [vmem:[%s271 + $0x18] sm:$0xff]
  %v276 = vld [vmem:[%s271 + $0x20] sm:$0xff]
  %v277 = vld [vmem:[%s271 + $0x28] sm:$0xff]
  %v278 = vld [vmem:[%s271 + $0x30] sm:$0xff]
  %v279 = vld [vmem:[%s271 + $0x38] sm:$0xff]
  %v280 = vld [vmem:[%s271 + $0x40] sm:$0xff]
  %v281 = vld [vmem:[%s271 + $0x48] sm:$0x7]
  %v282 = vld [vmem:[%s271 + $0x50] sm:$0x7]
  %v283 = vld [vmem:[%s271 + $0x58] sm:$0x7]
  %v285 = vsel %vm31, %v281, 0
  %v288 = vsel %vm31, %v282, 0
  %v291 = vsel %vm31, %v283, 0
  %293 = vmatpush.msra.mxu0 0.0
  %294 = vmatpush.msra.mxu0 0.0
  %295 = vmatpush.msra.mxu0 0.0
  %296 = vmatpush.msra.mxu0 0.0
  %297 = vmatpush.msra.mxu0 0.0
  %298 = vmatpush.msra.mxu0 0.0
  %299 = vmatpush.msra.mxu0 0.0
  %300 = vmatpush.msra.mxu0 0.0
  %301 = vmatpush.msra.mxu0 0.0
  %302 = vmatpush.msra.mxu0 0.0
  %303 = vmatpush.msra.mxu0 0.0
  %304 = vmatpush.msra.mxu0 0.0
  %305 = vmatpush.msra.mxu0 %v285
  %306 = vmatpush.msra.mxu0 %v278
  %307 = vmatpush.msra.mxu0 %v275
  %308 = vmatpush.msra.mxu0 %v272
  %309 = vmatmul.f32.gmra.mxu0 %v29
  %v310 = vpop.f32.mrf.mxu0
  %v311 = vadd.f32 0.0, %v310
  %312 = vdwg.mxu0
  %313 = vmatpush.msra.mxu0 0.0
  %314 = vmatpush.msra.mxu0 0.0
  %315 = vmatpush.msra.mxu0 0.0
  %316 = vmatpush.msra.mxu0 0.0
  %317 = vmatpush.msra.mxu0 0.0
  %318 = vmatpush.msra.mxu0 0.0
  %319 = vmatpush.msra.mxu0 0.0
  %320 = vmatpush.msra.mxu0 0.0
  %321 = vmatpush.msra.mxu0 0.0
  %322 = vmatpush.msra.mxu0 0.0
  %323 = vmatpush.msra.mxu0 0.0
  %324 = vmatpush.msra.mxu0 0.0
  %325 = vmatpush.msra.mxu0 %v288
  %326 = vmatpush.msra.mxu0 %v279
  %327 = vmatpush.msra.mxu0 %v276
  %328 = vmatpush.msra.mxu0 %v273
  %329 = vmatmul.f32.gmra.mxu0 %v29
  %v330 = vpop.f32.mrf.mxu0
  %v331 = vadd.f32 0.0, %v330
  %332 = vdwg.mxu0
  %333 = vmatpush.msra.mxu0 0.0
  %334 = vmatpush.msra.mxu0 0.0
  %335 = vmatpush.msra.mxu0 0.0
  %336 = vmatpush.msra.mxu0 0.0
  %337 = vmatpush.msra.mxu0 0.0
  %338 = vmatpush.msra.mxu0 0.0
  %339 = vmatpush.msra.mxu0 0.0
  %340 = vmatpush.msra.mxu0 0.0
  %341 = vmatpush.msra.mxu0 0.0
  %342 = vmatpush.msra.mxu0 0.0
  %343 = vmatpush.msra.mxu0 0.0
  %344 = vmatpush.msra.mxu0 0.0
  %345 = vmatpush.msra.mxu0 %v291
  %346 = vmatpush.msra.mxu0 %v280
  %347 = vmatpush.msra.mxu0 %v277
  %348 = vmatpush.msra.mxu0 %v274
  %349 = vmatmul.f32.gmra.mxu0 %v29
  %v350 = vpop.f32.mrf.mxu0
  %v351 = vadd.f32 0.0, %v350
  %352 = vdwg.mxu0
  %v353 = vmax.f32 %v268, %v311
  %v354 = vmax.f32 %v269, %v331
  %v355 = vmax.f32 %v270, %v351
  %s356 = scalar_lea.vmem %s1, 384
  %v357 = vld [vmem:[%s356] sm:$0xff]
  %v358 = vld [vmem:[%s356 + $0x8] sm:$0xff]
  %v359 = vld [vmem:[%s356 + $0x10] sm:$0xff]
  %v360 = vld [vmem:[%s356 + $0x18] sm:$0xff]
  %v361 = vld [vmem:[%s356 + $0x20] sm:$0xff]
  %v362 = vld [vmem:[%s356 + $0x28] sm:$0xff]
  %v363 = vld [vmem:[%s356 + $0x30] sm:$0xff]
  %v364 = vld [vmem:[%s356 + $0x38] sm:$0xff]
  %v365 = vld [vmem:[%s356 + $0x40] sm:$0xff]
  %v366 = vld [vmem:[%s356 + $0x48] sm:$0x7]
  %v367 = vld [vmem:[%s356 + $0x50] sm:$0x7]
  %v368 = vld [vmem:[%s356 + $0x58] sm:$0x7]
  %v370 = vsel %vm31, %v366, 0
  %v373 = vsel %vm31, %v367, 0
  %v376 = vsel %vm31, %v368, 0
  %378 = vmatpush.msra.mxu0 0.0
  %379 = vmatpush.msra.mxu0 0.0
  %380 = vmatpush.msra.mxu0 0.0
  %381 = vmatpush.msra.mxu0 0.0
  %382 = vmatpush.msra.mxu0 0.0
  %383 = vmatpush.msra.mxu0 0.0
  %384 = vmatpush.msra.mxu0 0.0
  %385 = vmatpush.msra.mxu0 0.0
  %386 = vmatpush.msra.mxu0 0.0
  %387 = vmatpush.msra.mxu0 0.0
  %388 = vmatpush.msra.mxu0 0.0
  %389 = vmatpush.msra.mxu0 0.0
  %390 = vmatpush.msra.mxu0 %v370
  %391 = vmatpush.msra.mxu0 %v363
  %392 = vmatpush.msra.mxu0 %v360
  %393 = vmatpush.msra.mxu0 %v357
  %394 = vmatmul.f32.gmra.mxu0 %v29
  %v395 = vpop.f32.mrf.mxu0
  %v396 = vadd.f32 0.0, %v395
  %397 = vdwg.mxu0
  %398 = vmatpush.msra.mxu0 0.0
  %399 = vmatpush.msra.mxu0 0.0
  %400 = vmatpush.msra.mxu0 0.0
  %401 = vmatpush.msra.mxu0 0.0
  %402 = vmatpush.msra.mxu0 0.0
  %403 = vmatpush.msra.mxu0 0.0
  %404 = vmatpush.msra.mxu0 0.0
  %405 = vmatpush.msra.mxu0 0.0
  %406 = vmatpush.msra.mxu0 0.0
  %407 = vmatpush.msra.mxu0 0.0
  %408 = vmatpush.msra.mxu0 0.0
  %409 = vmatpush.msra.mxu0 0.0
  %410 = vmatpush.msra.mxu0 %v373
  %411 = vmatpush.msra.mxu0 %v364
  %412 = vmatpush.msra.mxu0 %v361
  %413 = vmatpush.msra.mxu0 %v358
  %414 = vmatmul.f32.gmra.mxu0 %v29
  %v415 = vpop.f32.mrf.mxu0
  %v416 = vadd.f32 0.0, %v415
  %417 = vdwg.mxu0
  %418 = vmatpush.msra.mxu0 0.0
  %419 = vmatpush.msra.mxu0 0.0
  %420 = vmatpush.msra.mxu0 0.0
  %421 = vmatpush.msra.mxu0 0.0
  %422 = vmatpush.msra.mxu0 0.0
  %423 = vmatpush.msra.mxu0 0.0
  %424 = vmatpush.msra.mxu0 0.0
  %425 = vmatpush.msra.mxu0 0.0
  %426 = vmatpush.msra.mxu0 0.0
  %427 = vmatpush.msra.mxu0 0.0
  %428 = vmatpush.msra.mxu0 0.0
  %429 = vmatpush.msra.mxu0 0.0
  %430 = vmatpush.msra.mxu0 %v376
  %431 = vmatpush.msra.mxu0 %v365
  %432 = vmatpush.msra.mxu0 %v362
  %433 = vmatpush.msra.mxu0 %v359
  %434 = vmatmul.f32.gmra.mxu0 %v29
  %v435 = vpop.f32.mrf.mxu0
  %v436 = vadd.f32 0.0, %v435
  %437 = vdwg.mxu0
  %v438 = vmax.f32 %v353, %v396
  %v439 = vmax.f32 %v354, %v416
  %v440 = vmax.f32 %v355, %v436
  %s441 = scalar_lea.vmem %s1, 480
  %v442 = vld [vmem:[%s441] sm:$0xff]
  %v443 = vld [vmem:[%s441 + $0x8] sm:$0xff]
  %v444 = vld [vmem:[%s441 + $0x10] sm:$0xff]
  %v445 = vld [vmem:[%s441 + $0x18] sm:$0xff]
  %v446 = vld [vmem:[%s441 + $0x20] sm:$0xff]
  %v447 = vld [vmem:[%s441 + $0x28] sm:$0xff]
  %v448 = vld [vmem:[%s441 + $0x30] sm:$0xff]
  %v449 = vld [vmem:[%s441 + $0x38] sm:$0xff]
  %v450 = vld [vmem:[%s441 + $0x40] sm:$0xff]
  %v451 = vld [vmem:[%s441 + $0x48] sm:$0x7]
  %v452 = vld [vmem:[%s441 + $0x50] sm:$0x7]
  %v453 = vld [vmem:[%s441 + $0x58] sm:$0x7]
  %v455 = vsel %vm31, %v451, 0
  %v458 = vsel %vm31, %v452, 0
  %v461 = vsel %vm31, %v453, 0
  %463 = vmatpush.msra.mxu0 0.0
  %464 = vmatpush.msra.mxu0 0.0
  %465 = vmatpush.msra.mxu0 0.0
  %466 = vmatpush.msra.mxu0 0.0
  %467 = vmatpush.msra.mxu0 0.0
  %468 = vmatpush.msra.mxu0 0.0
  %469 = vmatpush.msra.mxu0 0.0
  %470 = vmatpush.msra.mxu0 0.0
  %471 = vmatpush.msra.mxu0 0.0
  %472 = vmatpush.msra.mxu0 0.0
  %473 = vmatpush.msra.mxu0 0.0
  %474 = vmatpush.msra.mxu0 0.0
  %475 = vmatpush.msra.mxu0 %v455
  %476 = vmatpush.msra.mxu0 %v448
  %477 = vmatpush.msra.mxu0 %v445
  %478 = vmatpush.msra.mxu0 %v442
  %479 = vmatmul.f32.gmra.mxu0 %v29
  %v480 = vpop.f32.mrf.mxu0
  %v481 = vadd.f32 0.0, %v480
  %482 = vdwg.mxu0
  %483 = vmatpush.msra.mxu0 0.0
  %484 = vmatpush.msra.mxu0 0.0
  %485 = vmatpush.msra.mxu0 0.0
  %486 = vmatpush.msra.mxu0 0.0
  %487 = vmatpush.msra.mxu0 0.0
  %488 = vmatpush.msra.mxu0 0.0
  %489 = vmatpush.msra.mxu0 0.0
  %490 = vmatpush.msra.mxu0 0.0
  %491 = vmatpush.msra.mxu0 0.0
  %492 = vmatpush.msra.mxu0 0.0
  %493 = vmatpush.msra.mxu0 0.0
  %494 = vmatpush.msra.mxu0 0.0
  %495 = vmatpush.msra.mxu0 %v458
  %496 = vmatpush.msra.mxu0 %v449
  %497 = vmatpush.msra.mxu0 %v446
  %498 = vmatpush.msra.mxu0 %v443
  %499 = vmatmul.f32.gmra.mxu0 %v29
  %v500 = vpop.f32.mrf.mxu0
  %v501 = vadd.f32 0.0, %v500
  %502 = vdwg.mxu0
  %503 = vmatpush.msra.mxu0 0.0
  %504 = vmatpush.msra.mxu0 0.0
  %505 = vmatpush.msra.mxu0 0.0
  %506 = vmatpush.msra.mxu0 0.0
  %507 = vmatpush.msra.mxu0 0.0
  %508 = vmatpush.msra.mxu0 0.0
  %509 = vmatpush.msra.mxu0 0.0
  %510 = vmatpush.msra.mxu0 0.0
  %511 = vmatpush.msra.mxu0 0.0
  %512 = vmatpush.msra.mxu0 0.0
  %513 = vmatpush.msra.mxu0 0.0
  %514 = vmatpush.msra.mxu0 0.0
  %515 = vmatpush.msra.mxu0 %v461
  %516 = vmatpush.msra.mxu0 %v450
  %517 = vmatpush.msra.mxu0 %v447
  %518 = vmatpush.msra.mxu0 %v444
  %519 = vmatmul.f32.gmra.mxu0 %v29
  %v520 = vpop.f32.mrf.mxu0
  %v521 = vadd.f32 0.0, %v520
  %522 = vdwg.mxu0
  %v523 = vmax.f32 %v438, %v481
  %v524 = vmax.f32 %v439, %v501
  %v525 = vmax.f32 %v440, %v521
  %s526 = scalar_lea.vmem %s1, 576
  %v527 = vld [vmem:[%s526] sm:$0xff]
  %v528 = vld [vmem:[%s526 + $0x8] sm:$0xff]
  %v529 = vld [vmem:[%s526 + $0x10] sm:$0xff]
  %v530 = vld [vmem:[%s526 + $0x18] sm:$0xff]
  %v531 = vld [vmem:[%s526 + $0x20] sm:$0xff]
  %v532 = vld [vmem:[%s526 + $0x28] sm:$0xff]
  %v533 = vld [vmem:[%s526 + $0x30] sm:$0xff]
  %v534 = vld [vmem:[%s526 + $0x38] sm:$0xff]
  %v535 = vld [vmem:[%s526 + $0x40] sm:$0xff]
  %v536 = vld [vmem:[%s526 + $0x48] sm:$0x7]
  %v537 = vld [vmem:[%s526 + $0x50] sm:$0x7]
  %v538 = vld [vmem:[%s526 + $0x58] sm:$0x7]
  %v540 = vsel %vm31, %v536, 0
  %v543 = vsel %vm31, %v537, 0
  %v546 = vsel %vm31, %v538, 0
  %548 = vmatpush.msra.mxu0 0.0
  %549 = vmatpush.msra.mxu0 0.0
  %550 = vmatpush.msra.mxu0 0.0
  %551 = vmatpush.msra.mxu0 0.0
  %552 = vmatpush.msra.mxu0 0.0
  %553 = vmatpush.msra.mxu0 0.0
  %554 = vmatpush.msra.mxu0 0.0
  %555 = vmatpush.msra.mxu0 0.0
  %556 = vmatpush.msra.mxu0 0.0
  %557 = vmatpush.msra.mxu0 0.0
  %558 = vmatpush.msra.mxu0 0.0
  %559 = vmatpush.msra.mxu0 0.0
  %560 = vmatpush.msra.mxu0 %v540
  %561 = vmatpush.msra.mxu0 %v533
  %562 = vmatpush.msra.mxu0 %v530
  %563 = vmatpush.msra.mxu0 %v527
  %564 = vmatmul.f32.gmra.mxu0 %v29
  %v565 = vpop.f32.mrf.mxu0
  %v566 = vadd.f32 0.0, %v565
  %567 = vdwg.mxu0
  %568 = vmatpush.msra.mxu0 0.0
  %569 = vmatpush.msra.mxu0 0.0
  %570 = vmatpush.msra.mxu0 0.0
  %571 = vmatpush.msra.mxu0 0.0
  %572 = vmatpush.msra.mxu0 0.0
  %573 = vmatpush.msra.mxu0 0.0
  %574 = vmatpush.msra.mxu0 0.0
  %575 = vmatpush.msra.mxu0 0.0
  %576 = vmatpush.msra.mxu0 0.0
  %577 = vmatpush.msra.mxu0 0.0
  %578 = vmatpush.msra.mxu0 0.0
  %579 = vmatpush.msra.mxu0 0.0
  %580 = vmatpush.msra.mxu0 %v543
  %581 = vmatpush.msra.mxu0 %v534
  %582 = vmatpush.msra.mxu0 %v531
  %583 = vmatpush.msra.mxu0 %v528
  %584 = vmatmul.f32.gmra.mxu0 %v29
  %v585 = vpop.f32.mrf.mxu0
  %v586 = vadd.f32 0.0, %v585
  %587 = vdwg.mxu0
  %588 = vmatpush.msra.mxu0 0.0
  %589 = vmatpush.msra.mxu0 0.0
  %590 = vmatpush.msra.mxu0 0.0
  %591 = vmatpush.msra.mxu0 0.0
  %592 = vmatpush.msra.mxu0 0.0
  %593 = vmatpush.msra.mxu0 0.0
  %594 = vmatpush.msra.mxu0 0.0
  %595 = vmatpush.msra.mxu0 0.0
  %596 = vmatpush.msra.mxu0 0.0
  %597 = vmatpush.msra.mxu0 0.0
  %598 = vmatpush.msra.mxu0 0.0
  %599 = vmatpush.msra.mxu0 0.0
  %600 = vmatpush.msra.mxu0 %v546
  %601 = vmatpush.msra.mxu0 %v535
  %602 = vmatpush.msra.mxu0 %v532
  %603 = vmatpush.msra.mxu0 %v529
  %604 = vmatmul.f32.gmra.mxu0 %v29
  %v605 = vpop.f32.mrf.mxu0
  %v606 = vadd.f32 0.0, %v605
  %607 = vdwg.mxu0
  %v608 = vmax.f32 %v523, %v566
  %v609 = vmax.f32 %v524, %v586
  %v610 = vmax.f32 %v525, %v606
  %s611 = scalar_lea.vmem %s1, 672
  %v612 = vld [vmem:[%s611] sm:$0xff]
  %v613 = vld [vmem:[%s611 + $0x8] sm:$0xff]
  %v614 = vld [vmem:[%s611 + $0x10] sm:$0xff]
  %v615 = vld [vmem:[%s611 + $0x18] sm:$0xff]
  %v616 = vld [vmem:[%s611 + $0x20] sm:$0xff]
  %v617 = vld [vmem:[%s611 + $0x28] sm:$0xff]
  %v618 = vld [vmem:[%s611 + $0x30] sm:$0xff]
  %v619 = vld [vmem:[%s611 + $0x38] sm:$0xff]
  %v620 = vld [vmem:[%s611 + $0x40] sm:$0xff]
  %v621 = vld [vmem:[%s611 + $0x48] sm:$0x7]
  %v622 = vld [vmem:[%s611 + $0x50] sm:$0x7]
  %v623 = vld [vmem:[%s611 + $0x58] sm:$0x7]
  %v625 = vsel %vm31, %v621, 0
  %v628 = vsel %vm31, %v622, 0
  %v631 = vsel %vm31, %v623, 0
  %633 = vmatpush.msra.mxu0 0.0
  %634 = vmatpush.msra.mxu0 0.0
  %635 = vmatpush.msra.mxu0 0.0
  %636 = vmatpush.msra.mxu0 0.0
  %637 = vmatpush.msra.mxu0 0.0
  %638 = vmatpush.msra.mxu0 0.0
  %639 = vmatpush.msra.mxu0 0.0
  %640 = vmatpush.msra.mxu0 0.0
  %641 = vmatpush.msra.mxu0 0.0
  %642 = vmatpush.msra.mxu0 0.0
  %643 = vmatpush.msra.mxu0 0.0
  %644 = vmatpush.msra.mxu0 0.0
  %645 = vmatpush.msra.mxu0 %v625
  %646 = vmatpush.msra.mxu0 %v618
  %647 = vmatpush.msra.mxu0 %v615
  %648 = vmatpush.msra.mxu0 %v612
  %649 = vmatmul.f32.gmra.mxu0 %v29
  %v650 = vpop.f32.mrf.mxu0
  %v651 = vadd.f32 0.0, %v650
  %652 = vdwg.mxu0
  %653 = vmatpush.msra.mxu0 0.0
  %654 = vmatpush.msra.mxu0 0.0
  %655 = vmatpush.msra.mxu0 0.0
  %656 = vmatpush.msra.mxu0 0.0
  %657 = vmatpush.msra.mxu0 0.0
  %658 = vmatpush.msra.mxu0 0.0
  %659 = vmatpush.msra.mxu0 0.0
  %660 = vmatpush.msra.mxu0 0.0
  %661 = vmatpush.msra.mxu0 0.0
  %662 = vmatpush.msra.mxu0 0.0
  %663 = vmatpush.msra.mxu0 0.0
  %664 = vmatpush.msra.mxu0 0.0
  %665 = vmatpush.msra.mxu0 %v628
  %666 = vmatpush.msra.mxu0 %v619
  %667 = vmatpush.msra.mxu0 %v616
  %668 = vmatpush.msra.mxu0 %v613
  %669 = vmatmul.f32.gmra.mxu0 %v29
  %v670 = vpop.f32.mrf.mxu0
  %v671 = vadd.f32 0.0, %v670
  %672 = vdwg.mxu0
  %673 = vmatpush.msra.mxu0 0.0
  %674 = vmatpush.msra.mxu0 0.0
  %675 = vmatpush.msra.mxu0 0.0
  %676 = vmatpush.msra.mxu0 0.0
  %677 = vmatpush.msra.mxu0 0.0
  %678 = vmatpush.msra.mxu0 0.0
  %679 = vmatpush.msra.mxu0 0.0
  %680 = vmatpush.msra.mxu0 0.0
  %681 = vmatpush.msra.mxu0 0.0
  %682 = vmatpush.msra.mxu0 0.0
  %683 = vmatpush.msra.mxu0 0.0
  %684 = vmatpush.msra.mxu0 0.0
  %685 = vmatpush.msra.mxu0 %v631
  %686 = vmatpush.msra.mxu0 %v620
  %687 = vmatpush.msra.mxu0 %v617
  %688 = vmatpush.msra.mxu0 %v614
  %689 = vmatmul.f32.gmra.mxu0 %v29
  %v690 = vpop.f32.mrf.mxu0
  %v691 = vadd.f32 0.0, %v690
  %692 = vdwg.mxu0
  %v693 = vmax.f32 %v608, %v651
  %v694 = vmax.f32 %v609, %v671
  %v695 = vmax.f32 %v610, %v691
  %v696 = vld [vmem:[%s2] sm:$0xff]
  %698 = vset.pattern.permute.xlu0 0
  %699 = vperm.xlu0 %698, %v696
  %v700 = vpop.permute.xlu0 %699
  %v702 = vadd.f32 %v693, %v700
  %v703 = vadd.f32 %v694, %v700
  %v704 = vadd.f32 %v695, %v700
  %v705 = vmax.f32 %v702, 0.0
  %v706 = vmax.f32 %v703, 0.0
  %v707 = vmax.f32 %v704, 0.0
  %708 = vst [vmem:[%s3] sm:$0xff] %v705
  %709 = vst [vmem:[%s3 + $0x8] sm:$0xff] %v706
  %vm710 = vcmask 523264
  %711 = vst.msk [vmem:[%s3 + $0x10] sm:$0xff] %vm710, %v707
  // Predicated region
  $region14: #{discriminator_forward.5} parent=0 // pred_check
    _
  $region15: #{discriminator_forward.5} parent=0 // pred_check_branch
    %713 = sbr.rel (0) target = $region17
  $region16: #{discriminator_forward.5} parent=0 // pred_region
    _
  $region17: #{discriminator_forward.5} parent=0 // pred_fallthru
    _
  // Predicated region
  $region18: #{discriminator_forward.5} parent=0 // pred_check
    _
  $region19: #{discriminator_forward.5} parent=0 // pred_check_branch
    %715 = sbr.rel (0) target = $region21
  $region20: #{discriminator_forward.5} parent=0 // pred_region
    _
  $region21: #{discriminator_forward.5} parent=0 // pred_fallthru
    _

// kernel: discriminator_forward.6
$region0: #{discriminator_forward.6}
  #allocation0 [shape = 'u32[]', space=smem, size = 0x4, offset = 0x4, fixed_abs, tag = 'smem constant byte address 0x4 - core index']
  #allocation1 [shape = 'u32[72,128]{1,0:T(1,128)}', space=vmem, size = 0x9000, scoped, tag = 'internal scratch']
  %s0 = inlined_call_operand.vmem [shape: f32[16,216], index: 0, kind: input, shape index: {}]
  %s1 = inlined_call_operand.vmem [shape: f32[1,216,40], index: 1, kind: input, shape index: {}]
  %s2 = inlined_call_operand.vmem [shape: f32[16,1], index: 2, kind: input, shape index: {}]
  %s3 = inlined_call_operand.vmem [shape: f32[16,40], index: 3, kind: output, shape index: {}]
  %s4 = sld [smem:[#allocation0]]
  $region22: #{discriminator_forward.6} parent=0
    _
  %s6 = ssub.s32 1, %s4
  %s7 = scalar_select 0, %s6, %s4
  // Predicated region
  $region2: #{discriminator_forward.6} parent=0 // pred_check
    _
  $region3: #{discriminator_forward.6} parent=0 // pred_check_branch
    %9 = sbr.rel (0) target = $region5
  $region4: #{discriminator_forward.6} parent=0 // pred_region
    _
  $region5: #{discriminator_forward.6} parent=0 // pred_fallthru
    _
  // Predicated region
  $region6: #{discriminator_forward.6} parent=0 // pred_check
    _
  $region7: #{discriminator_forward.6} parent=0 // pred_check_branch
    %11 = sbr.rel (0) target = $region9
  $region8: #{discriminator_forward.6} parent=0 // pred_region
    _
  $region9: #{discriminator_forward.6} parent=0 // pred_fallthru
    _
  // Predicated region
  $region10: #{discriminator_forward.6} parent=0 // pred_check
    _
  $region11: #{discriminator_forward.6} parent=0 // pred_check_branch
    %13 = sbr.rel (0) target = $region13
  $region12: #{discriminator_forward.6} parent=0 // pred_region
    _
  $region13: #{discriminator_forward.6} parent=0 // pred_fallthru
    _
  %v14 = vld [vmem:[%s0] sm:$0xff]
  %v15 = vld [vmem:[%s0 + $0x8] sm:$0xff]
  %v16 = vld [vmem:[%s0 + $0x10] sm:$0xff]
  %v17 = vld [vmem:[%s0 + $0x18] sm:$0xff]
  %v18 = vld [vmem:[%s1] sm:$0xff]
  %v19 = vld [vmem:[%s1 + $0x8] sm:$0xff]
  %v20 = vld [vmem:[%s1 + $0x10] sm:$0xff]
  %v21 = vld [vmem:[%s1 + $0x18] sm:$0xff]
  %v22 = vld [vmem:[%s1 + $0x20] sm:$0xff]
  %v23 = vld [vmem:[%s1 + $0x28] sm:$0xff]
  %v24 = vld [vmem:[%s1 + $0x30] sm:$0xff]
  %v25 = vld [vmem:[%s1 + $0x38] sm:$0xff]
  %v26 = vld [vmem:[%s1 + $0x40] sm:$0xff]
  %v27 = vld [vmem:[%s1 + $0x48] sm:$0xff]
  %v28 = vld [vmem:[%s1 + $0x50] sm:$0xff]
  %v29 = vld [vmem:[%s1 + $0x58] sm:$0xff]
  %v30 = vld [vmem:[%s1 + $0x60] sm:$0xff]
  %v31 = vld [vmem:[%s1 + $0x68] sm:$0xff]
  %v32 = vld [vmem:[%s1 + $0x70] sm:$0xff]
  %v33 = vld [vmem:[%s1 + $0x78] sm:$0xff]
  %v34 = vld [vmem:[%s1 + $0x80] sm:$0xff]
  %v35 = vld [vmem:[%s1 + $0x88] sm:$0xff]
  %v36 = vld [vmem:[%s1 + $0x90] sm:$0xff]
  %v37 = vld [vmem:[%s1 + $0x98] sm:$0xff]
  %v38 = vld [vmem:[%s1 + $0xa0] sm:$0xff]
  %v39 = vld [vmem:[%s1 + $0xa8] sm:$0xff]
  %v40 = vld [vmem:[%s1 + $0xb0] sm:$0xff]
  %v41 = vld [vmem:[%s1 + $0xb8] sm:$0xff]
  %v42 = vld [vmem:[%s1 + $0xc0] sm:$0xff]
  %v43 = vld [vmem:[%s1 + $0xc8] sm:$0xff]
  %v44 = vld [vmem:[%s1 + $0xd0] sm:$0xff]
  %v45 = vld [vmem:[%s2] sm:$0xff]
  %v46 = vld [vmem:[%s2 + $0x8] sm:$0xff]
  %48 = vset.pattern.permute.xlu0 0
  %49 = vperm.xlu0 %48, %v45
  %v50 = vpop.permute.xlu0 %49
  %53 = vset.pattern.permute.xlu0 0
  %54 = vperm.xlu0 %53, %v46
  %v55 = vpop.permute.xlu0 %54
  %vm57 = vcmask 719872
  %v59 = vsel %vm57, %v15, 0
  %v62 = vsel %vm57, %v17, 0
  %64 = vmatpush.msra.mxu0 %v33
  %65 = vmatpush.msra.mxu0 %v32
  %66 = vmatpush.msra.mxu0 %v31
  %67 = vmatpush.msra.mxu0 %v30
  %68 = vmatpush.msra.mxu0 %v29
  %69 = vmatpush.msra.mxu0 %v28
  %70 = vmatpush.msra.mxu0 %v27
  %71 = vmatpush.msra.mxu0 %v26
  %72 = vmatpush.msra.mxu0 %v25
  %73 = vmatpush.msra.mxu0 %v24
  %74 = vmatpush.msra.mxu0 %v23
  %75 = vmatpush.msra.mxu0 %v22
  %76 = vmatpush.msra.mxu0 %v21
  %77 = vmatpush.msra.mxu0 %v20
  %78 = vmatpush.msra.mxu0 %v19
  %79 = vmatpush.msra.mxu0 %v18
  %80 = vmatmul.f32.gmra.mxu0 %v14
  %v81 = vpop.f32.mrf.mxu0
  %v82 = vadd.f32 %v50, %v81
  %83 = vmatmul.f32.gmra.mxu0 %v16
  %v84 = vpop.f32.mrf.mxu0
  %v85 = vadd.f32 %v55, %v84
  %86 = vdwg.mxu0
  %87 = vmatpush.msra.mxu0 0.0
  %88 = vmatpush.msra.mxu0 0.0
  %89 = vmatpush.msra.mxu0 0.0
  %90 = vmatpush.msra.mxu0 0.0
  %91 = vmatpush.msra.mxu0 0.0
  %92 = vmatpush.msra.mxu0 %v44
  %93 = vmatpush.msra.mxu0 %v43
  %94 = vmatpush.msra.mxu0 %v42
  %95 = vmatpush.msra.mxu0 %v41
  %96 = vmatpush.msra.mxu0 %v40
  %97 = vmatpush.msra.mxu0 %v39
  %98 = vmatpush.msra.mxu0 %v38
  %99 = vmatpush.msra.mxu0 %v37
  %100 = vmatpush.msra.mxu0 %v36
  %101 = vmatpush.msra.mxu0 %v35
  %102 = vmatpush.msra.mxu0 %v34
  %103 = vmatmul.f32.gmra.mxu0 %v59
  %v104 = vpop.f32.mrf.mxu0
  %v105 = vadd.f32 %v82, %v104
  %106 = vmatmul.f32.gmra.mxu0 %v62
  %v107 = vpop.f32.mrf.mxu0
  %v108 = vadd.f32 %v85, %v107
  %109 = vdwg.mxu0
  %v110 = vmax.f32 %v105, 0.0
  %v111 = vmax.f32 %v108, 0.0
  %vm112 = vcmask 326656
  %113 = vst.msk [vmem:[%s3] sm:$0xff] %vm112, %v110
  %114 = vst.msk [vmem:[%s3 + $0x8] sm:$0xff] %vm112, %v111
  // Predicated region
  $region14: #{discriminator_forward.6} parent=0 // pred_check
    _
  $region15: #{discriminator_forward.6} parent=0 // pred_check_branch
    %116 = sbr.rel (0) target = $region17
  $region16: #{discriminator_forward.6} parent=0 // pred_region
    _
  $region17: #{discriminator_forward.6} parent=0 // pred_fallthru
    _
  // Predicated region
  $region18: #{discriminator_forward.6} parent=0 // pred_check
    _
  $region19: #{discriminator_forward.6} parent=0 // pred_check_branch
    %118 = sbr.rel (0) target = $region21
  $region20: #{discriminator_forward.6} parent=0 // pred_region
    _
  $region21: #{discriminator_forward.6} parent=0 // pred_fallthru
    _

// kernel: discriminator_forward.7
$region0: #{discriminator_forward.7}
  #allocation0 [shape = 'u32[]', space=smem, size = 0x4, offset = 0x4, fixed_abs, tag = 'smem constant byte address 0x4 - core index']
  #allocation1 [shape = 'u32[72,128]{1,0:T(1,128)}', space=vmem, size = 0x9000, scoped, tag = 'internal scratch']
  %s0 = inlined_call_operand.vmem [shape: f32[16,432], index: 0, kind: input, shape index: {}]
  %s1 = inlined_call_operand.vmem [shape: f32[4,432,4], index: 1, kind: input, shape index: {}]
  %s2 = inlined_call_operand.vmem [shape: f32[16,1], index: 2, kind: input, shape index: {}]
  %s3 = inlined_call_operand.vmem [shape: f32[16,4], index: 3, kind: output, shape index: {}]
  %s4 = sld [smem:[#allocation0]]
  $region22: #{discriminator_forward.7} parent=0
    _
  %s6 = ssub.s32 1, %s4
  %s7 = scalar_select 0, %s6, %s4
  // Predicated region
  $region2: #{discriminator_forward.7} parent=0 // pred_check
    _
  $region3: #{discriminator_forward.7} parent=0 // pred_check_branch
    %9 = sbr.rel (0) target = $region5
  $region4: #{discriminator_forward.7} parent=0 // pred_region
    _
  $region5: #{discriminator_forward.7} parent=0 // pred_fallthru
    _
  // Predicated region
  $region6: #{discriminator_forward.7} parent=0 // pred_check
    _
  $region7: #{discriminator_forward.7} parent=0 // pred_check_branch
    %11 = sbr.rel (0) target = $region9
  $region8: #{discriminator_forward.7} parent=0 // pred_region
    _
  $region9: #{discriminator_forward.7} parent=0 // pred_fallthru
    _
  // Predicated region
  $region10: #{discriminator_forward.7} parent=0 // pred_check
    _
  $region11: #{discriminator_forward.7} parent=0 // pred_check_branch
    %13 = sbr.rel (0) target = $region13
  $region12: #{discriminator_forward.7} parent=0 // pred_region
    _
  $region13: #{discriminator_forward.7} parent=0 // pred_fallthru
    _
  %v14 = vld [vmem:[%s0] sm:$0xff]
  %v15 = vld [vmem:[%s0 + $0x8] sm:$0xff]
  %v16 = vld [vmem:[%s0 + $0x10] sm:$0xff]
  %v17 = vld [vmem:[%s0 + $0x18] sm:$0xff]
  %v18 = vld [vmem:[%s0 + $0x20] sm:$0xff]
  %v19 = vld [vmem:[%s0 + $0x28] sm:$0xff]
  %v20 = vld [vmem:[%s0 + $0x30] sm:$0xff]
  %v21 = vld [vmem:[%s0 + $0x38] sm:$0xff]
  %v22 = vld [vmem:[%s1] sm:$0xff]
  %v23 = vld [vmem:[%s1 + $0x8] sm:$0xff]
  %v24 = vld [vmem:[%s1 + $0x10] sm:$0xff]
  %v25 = vld [vmem:[%s1 + $0x18] sm:$0xff]
  %v26 = vld [vmem:[%s1 + $0x20] sm:$0xff]
  %v27 = vld [vmem:[%s1 + $0x28] sm:$0xff]
  %v28 = vld [vmem:[%s1 + $0x30] sm:$0xff]
  %v29 = vld [vmem:[%s1 + $0x38] sm:$0xff]
  %v30 = vld [vmem:[%s1 + $0x40] sm:$0xff]
  %v31 = vld [vmem:[%s1 + $0x48] sm:$0xff]
  %v32 = vld [vmem:[%s1 + $0x50] sm:$0xff]
  %v33 = vld [vmem:[%s1 + $0x58] sm:$0xff]
  %v34 = vld [vmem:[%s1 + $0x60] sm:$0xff]
  %v35 = vld [vmem:[%s1 + $0x68] sm:$0xff]
  %v36 = vld [vmem:[%s1 + $0x70] sm:$0xff]
  %v37 = vld [vmem:[%s1 + $0x78] sm:$0xff]
  %v38 = vld [vmem:[%s1 + $0x80] sm:$0xff]
  %v39 = vld [vmem:[%s1 + $0x88] sm:$0xff]
  %v40 = vld [vmem:[%s1 + $0x90] sm:$0xff]
  %v41 = vld [vmem:[%s1 + $0x98] sm:$0xff]
  %v42 = vld [vmem:[%s1 + $0xa0] sm:$0xff]
  %v43 = vld [vmem:[%s1 + $0xa8] sm:$0xff]
  %v44 = vld [vmem:[%s1 + $0xb0] sm:$0xff]
  %v45 = vld [vmem:[%s1 + $0xb8] sm:$0xff]
  %v46 = vld [vmem:[%s1 + $0xc0] sm:$0xff]
  %v47 = vld [vmem:[%s1 + $0xc8] sm:$0xff]
  %v48 = vld [vmem:[%s1 + $0xd0] sm:$0xff]
  %v49 = vld [vmem:[%s1 + $0xd8] sm:$0xff]
  %v50 = vld [vmem:[%s1 + $0xe0] sm:$0xff]
  %v51 = vld [vmem:[%s1 + $0xe8] sm:$0xff]
  %v52 = vld [vmem:[%s1 + $0xf0] sm:$0xff]
  %v53 = vld [vmem:[%s1 + $0xf8] sm:$0xff]
  %v54 = vld [vmem:[%s1 + $0x100] sm:$0xff]
  %v55 = vld [vmem:[%s1 + $0x108] sm:$0xff]
  %v56 = vld [vmem:[%s1 + $0x110] sm:$0xff]
  %v57 = vld [vmem:[%s1 + $0x118] sm:$0xff]
  %v58 = vld [vmem:[%s1 + $0x120] sm:$0xff]
  %v59 = vld [vmem:[%s1 + $0x128] sm:$0xff]
  %v60 = vld [vmem:[%s1 + $0x130] sm:$0xff]
  %v61 = vld [vmem:[%s1 + $0x138] sm:$0xff]
  %v62 = vld [vmem:[%s1 + $0x140] sm:$0xff]
  %v63 = vld [vmem:[%s1 + $0x148] sm:$0xff]
  %v64 = vld [vmem:[%s1 + $0x150] sm:$0xff]
  %v65 = vld [vmem:[%s1 + $0x158] sm:$0xff]
  %v66 = vld [vmem:[%s1 + $0x160] sm:$0xff]
  %v67 = vld [vmem:[%s1 + $0x168] sm:$0xff]
  %v68 = vld [vmem:[%s1 + $0x170] sm:$0xff]
  %v69 = vld [vmem:[%s1 + $0x178] sm:$0xff]
  %v70 = vld [vmem:[%s1 + $0x180] sm:$0xff]
  %v71 = vld [vmem:[%s1 + $0x188] sm:$0xff]
  %v72 = vld [vmem:[%s1 + $0x190] sm:$0xff]
  %v73 = vld [vmem:[%s1 + $0x198] sm:$0xff]
  %v74 = vld [vmem:[%s1 + $0x1a0] sm:$0xff]
  %v75 = vld [vmem:[%s1 + $0x1a8] sm:$0xff]
  %vm76 = vcmask 392192
  %v78 = vsel %vm76, %v17, 0
  %v81 = vsel %vm76, %v21, 0
  %83 = vmatpush.msra.mxu0 %v37
  %84 = vmatpush.msra.mxu0 %v36
  %85 = vmatpush.msra.mxu0 %v35
  %86 = vmatpush.msra.mxu0 %v34
  %87 = vmatpush.msra.mxu0 %v33
  %88 = vmatpush.msra.mxu0 %v32
  %89 = vmatpush.msra.mxu0 %v31
  %90 = vmatpush.msra.mxu0 %v30
  %91 = vmatpush.msra.mxu0 %v29
  %92 = vmatpush.msra.mxu0 %v28
  %93 = vmatpush.msra.mxu0 %v27
  %94 = vmatpush.msra.mxu0 %v26
  %95 = vmatpush.msra.mxu0 %v25
  %96 = vmatpush.msra.mxu0 %v24
  %97 = vmatpush.msra.mxu0 %v23
  %98 = vmatpush.msra.mxu0 %v22
  %99 = vmatmul.f32.gmra.mxu0 %v14
  %v100 = vpop.f32.mrf.mxu0
  %v101 = vadd.f32 0.0, %v100
  %102 = vmatmul.f32.gmra.mxu0 %v18
  %v103 = vpop.f32.mrf.mxu0
  %v104 = vadd.f32 0.0, %v103
  %105 = vdwg.mxu0
  %106 = vmatpush.msra.mxu0 %v53
  %107 = vmatpush.msra.mxu0 %v52
  %108 = vmatpush.msra.mxu0 %v51
  %109 = vmatpush.msra.mxu0 %v50
  %110 = vmatpush.msra.mxu0 %v49
  %111 = vmatpush.msra.mxu0 %v48
  %112 = vmatpush.msra.mxu0 %v47
  %113 = vmatpush.msra.mxu0 %v46
  %114 = vmatpush.msra.mxu0 %v45
  %115 = vmatpush.msra.mxu0 %v44
  %116 = vmatpush.msra.mxu0 %v43
  %117 = vmatpush.msra.mxu0 %v42
  %118 = vmatpush.msra.mxu0 %v41
  %119 = vmatpush.msra.mxu0 %v40
  %120 = vmatpush.msra.mxu0 %v39
  %121 = vmatpush.msra.mxu0 %v38
  %122 = vmatmul.f32.gmra.mxu0 %v15
  %v123 = vpop.f32.mrf.mxu0
  %v124 = vadd.f32 %v101, %v123
  %125 = vmatmul.f32.gmra.mxu0 %v19
  %v126 = vpop.f32.mrf.mxu0
  %v127 = vadd.f32 %v104, %v126
  %128 = vdwg.mxu0
  %129 = vmatpush.msra.mxu0 %v69
  %130 = vmatpush.msra.mxu0 %v68
  %131 = vmatpush.msra.mxu0 %v67
  %132 = vmatpush.msra.mxu0 %v66
  %133 = vmatpush.msra.mxu0 %v65
  %134 = vmatpush.msra.mxu0 %v64
  %135 = vmatpush.msra.mxu0 %v63
  %136 = vmatpush.msra.mxu0 %v62
  %137 = vmatpush.msra.mxu0 %v61
  %138 = vmatpush.msra.mxu0 %v60
  %139 = vmatpush.msra.mxu0 %v59
  %140 = vmatpush.msra.mxu0 %v58
  %141 = vmatpush.msra.mxu0 %v57
  %142 = vmatpush.msra.mxu0 %v56
  %143 = vmatpush.msra.mxu0 %v55
  %144 = vmatpush.msra.mxu0 %v54
  %145 = vmatmul.f32.gmra.mxu0 %v16
  %v146 = vpop.f32.mrf.mxu0
  %v147 = vadd.f32 %v124, %v146
  %148 = vmatmul.f32.gmra.mxu0 %v20
  %v149 = vpop.f32.mrf.mxu0
  %v150 = vadd.f32 %v127, %v149
  %151 = vdwg.mxu0
  %152 = vmatpush.msra.mxu0 0.0
  %153 = vmatpush.msra.mxu0 0.0
  %154 = vmatpush.msra.mxu0 0.0
  %155 = vmatpush.msra.mxu0 0.0
  %156 = vmatpush.msra.mxu0 0.0
  %157 = vmatpush.msra.mxu0 0.0
  %158 = vmatpush.msra.mxu0 0.0
  %159 = vmatpush.msra.mxu0 0.0
  %160 = vmatpush.msra.mxu0 0.0
  %161 = vmatpush.msra.mxu0 0.0
  %162 = vmatpush.msra.mxu0 %v75
  %163 = vmatpush.msra.mxu0 %v74
  %164 = vmatpush.msra.mxu0 %v73
  %165 = vmatpush.msra.mxu0 %v72
  %166 = vmatpush.msra.mxu0 %v71
  %167 = vmatpush.msra.mxu0 %v70
  %168 = vmatmul.f32.gmra.mxu0 %v78
  %v169 = vpop.f32.mrf.mxu0
  %v170 = vadd.f32 %v147, %v169
  %171 = vmatmul.f32.gmra.mxu0 %v81
  %v172 = vpop.f32.mrf.mxu0
  %v173 = vadd.f32 %v150, %v172
  %174 = vdwg.mxu0
  %s175 = scalar_lea.vmem %s1, 432
  %v176 = vld [vmem:[%s175] sm:$0xff]
  %v177 = vld [vmem:[%s175 + $0x8] sm:$0xff]
  %v178 = vld [vmem:[%s175 + $0x10] sm:$0xff]
  %v179 = vld [vmem:[%s175 + $0x18] sm:$0xff]
  %v180 = vld [vmem:[%s175 + $0x20] sm:$0xff]
  %v181 = vld [vmem:[%s175 + $0x28] sm:$0xff]
  %v182 = vld [vmem:[%s175 + $0x30] sm:$0xff]
  %v183 = vld [vmem:[%s175 + $0x38] sm:$0xff]
  %v184 = vld [vmem:[%s175 + $0x40] sm:$0xff]
  %v185 = vld [vmem:[%s175 + $0x48] sm:$0xff]
  %v186 = vld [vmem:[%s175 + $0x50] sm:$0xff]
  %v187 = vld [vmem:[%s175 + $0x58] sm:$0xff]
  %v188 = vld [vmem:[%s175 + $0x60] sm:$0xff]
  %v189 = vld [vmem:[%s175 + $0x68] sm:$0xff]
  %v190 = vld [vmem:[%s175 + $0x70] sm:$0xff]
  %v191 = vld [vmem:[%s175 + $0x78] sm:$0xff]
  %v192 = vld [vmem:[%s175 + $0x80] sm:$0xff]
  %v193 = vld [vmem:[%s175 + $0x88] sm:$0xff]
  %v194 = vld [vmem:[%s175 + $0x90] sm:$0xff]
  %v195 = vld [vmem:[%s175 + $0x98] sm:$0xff]
  %v196 = vld [vmem:[%s175 + $0xa0] sm:$0xff]
  %v197 = vld [vmem:[%s175 + $0xa8] sm:$0xff]
  %v198 = vld [vmem:[%s175 + $0xb0] sm:$0xff]
  %v199 = vld [vmem:[%s175 + $0xb8] sm:$0xff]
  %v200 = vld [vmem:[%s175 + $0xc0] sm:$0xff]
  %v201 = vld [vmem:[%s175 + $0xc8] sm:$0xff]
  %v202 = vld [vmem:[%s175 + $0xd0] sm:$0xff]
  %v203 = vld [vmem:[%s175 + $0xd8] sm:$0xff]
  %v204 = vld [vmem:[%s175 + $0xe0] sm:$0xff]
  %v205 = vld [vmem:[%s175 + $0xe8] sm:$0xff]
  %v206 = vld [vmem:[%s175 + $0xf0] sm:$0xff]
  %v207 = vld [vmem:[%s175 + $0xf8] sm:$0xff]
  %v208 = vld [vmem:[%s175 + $0x100] sm:$0xff]
  %v209 = vld [vmem:[%s175 + $0x108] sm:$0xff]
  %v210 = vld [vmem:[%s175 + $0x110] sm:$0xff]
  %v211 = vld [vmem:[%s175 + $0x118] sm:$0xff]
  %v212 = vld [vmem:[%s175 + $0x120] sm:$0xff]
  %v213 = vld [vmem:[%s175 + $0x128] sm:$0xff]
  %v214 = vld [vmem:[%s175 + $0x130] sm:$0xff]
  %v215 = vld [vmem:[%s175 + $0x138] sm:$0xff]
  %v216 = vld [vmem:[%s175 + $0x140] sm:$0xff]
  %v217 = vld [vmem:[%s175 + $0x148] sm:$0xff]
  %v218 = vld [vmem:[%s175 + $0x150] sm:$0xff]
  %v219 = vld [vmem:[%s175 + $0x158] sm:$0xff]
  %v220 = vld [vmem:[%s175 + $0x160] sm:$0xff]
  %v221 = vld [vmem:[%s175 + $0x168] sm:$0xff]
  %v222 = vld [vmem:[%s175 + $0x170] sm:$0xff]
  %v223 = vld [vmem:[%s175 + $0x178] sm:$0xff]
  %v224 = vld [vmem:[%s175 + $0x180] sm:$0xff]
  %v225 = vld [vmem:[%s175 + $0x188] sm:$0xff]
  %v226 = vld [vmem:[%s175 + $0x190] sm:$0xff]
  %v227 = vld [vmem:[%s175 + $0x198] sm:$0xff]
  %v228 = vld [vmem:[%s175 + $0x1a0] sm:$0xff]
  %v229 = vld [vmem:[%s175 + $0x1a8] sm:$0xff]
  %230 = vmatpush.msra.mxu0 %v191
  %231 = vmatpush.msra.mxu0 %v190
  %232 = vmatpush.msra.mxu0 %v189
  %233 = vmatpush.msra.mxu0 %v188
  %234 = vmatpush.msra.mxu0 %v187
  %235 = vmatpush.msra.mxu0 %v186
  %236 = vmatpush.msra.mxu0 %v185
  %237 = vmatpush.msra.mxu0 %v184
  %238 = vmatpush.msra.mxu0 %v183
  %239 = vmatpush.msra.mxu0 %v182
  %240 = vmatpush.msra.mxu0 %v181
  %241 = vmatpush.msra.mxu0 %v180
  %242 = vmatpush.msra.mxu0 %v179
  %243 = vmatpush.msra.mxu0 %v178
  %244 = vmatpush.msra.mxu0 %v177
  %245 = vmatpush.msra.mxu0 %v176
  %246 = vmatmul.f32.gmra.mxu0 %v14
  %v247 = vpop.f32.mrf.mxu0
  %v248 = vadd.f32 0.0, %v247
  %249 = vmatmul.f32.gmra.mxu0 %v18
  %v250 = vpop.f32.mrf.mxu0
  %v251 = vadd.f32 0.0, %v250
  %252 = vdwg.mxu0
  %253 = vmatpush.msra.mxu0 %v207
  %254 = vmatpush.msra.mxu0 %v206
  %255 = vmatpush.msra.mxu0 %v205
  %256 = vmatpush.msra.mxu0 %v204
  %257 = vmatpush.msra.mxu0 %v203
  %258 = vmatpush.msra.mxu0 %v202
  %259 = vmatpush.msra.mxu0 %v201
  %260 = vmatpush.msra.mxu0 %v200
  %261 = vmatpush.msra.mxu0 %v199
  %262 = vmatpush.msra.mxu0 %v198
  %263 = vmatpush.msra.mxu0 %v197
  %264 = vmatpush.msra.mxu0 %v196
  %265 = vmatpush.msra.mxu0 %v195
  %266 = vmatpush.msra.mxu0 %v194
  %267 = vmatpush.msra.mxu0 %v193
  %268 = vmatpush.msra.mxu0 %v192
  %269 = vmatmul.f32.gmra.mxu0 %v15
  %v270 = vpop.f32.mrf.mxu0
  %v271 = vadd.f32 %v248, %v270
  %272 = vmatmul.f32.gmra.mxu0 %v19
  %v273 = vpop.f32.mrf.mxu0
  %v274 = vadd.f32 %v251, %v273
  %275 = vdwg.mxu0
  %276 = vmatpush.msra.mxu0 %v223
  %277 = vmatpush.msra.mxu0 %v222
  %278 = vmatpush.msra.mxu0 %v221
  %279 = vmatpush.msra.mxu0 %v220
  %280 = vmatpush.msra.mxu0 %v219
  %281 = vmatpush.msra.mxu0 %v218
  %282 = vmatpush.msra.mxu0 %v217
  %283 = vmatpush.msra.mxu0 %v216
  %284 = vmatpush.msra.mxu0 %v215
  %285 = vmatpush.msra.mxu0 %v214
  %286 = vmatpush.msra.mxu0 %v213
  %287 = vmatpush.msra.mxu0 %v212
  %288 = vmatpush.msra.mxu0 %v211
  %289 = vmatpush.msra.mxu0 %v210
  %290 = vmatpush.msra.mxu0 %v209
  %291 = vmatpush.msra.mxu0 %v208
  %292 = vmatmul.f32.gmra.mxu0 %v16
  %v293 = vpop.f32.mrf.mxu0
  %v294 = vadd.f32 %v271, %v293
  %295 = vmatmul.f32.gmra.mxu0 %v20
  %v296 = vpop.f32.mrf.mxu0
  %v297 = vadd.f32 %v274, %v296
  %298 = vdwg.mxu0
  %299 = vmatpush.msra.mxu0 0.0
  %300 = vmatpush.msra.mxu0 0.0
  %301 = vmatpush.msra.mxu0 0.0
  %302 = vmatpush.msra.mxu0 0.0
  %303 = vmatpush.msra.mxu0 0.0
  %304 = vmatpush.msra.mxu0 0.0
  %305 = vmatpush.msra.mxu0 0.0
  %306 = vmatpush.msra.mxu0 0.0
  %307 = vmatpush.msra.mxu0 0.0
  %308 = vmatpush.msra.mxu0 0.0
  %309 = vmatpush.msra.mxu0 %v229
  %310 = vmatpush.msra.mxu0 %v228
  %311 = vmatpush.msra.mxu0 %v227
  %312 = vmatpush.msra.mxu0 %v226
  %313 = vmatpush.msra.mxu0 %v225
  %314 = vmatpush.msra.mxu0 %v224
  %315 = vmatmul.f32.gmra.mxu0 %v78
  %v316 = vpop.f32.mrf.mxu0
  %v317 = vadd.f32 %v294, %v316
  %318 = vmatmul.f32.gmra.mxu0 %v81
  %v319 = vpop.f32.mrf.mxu0
  %v320 = vadd.f32 %v297, %v319
  %321 = vdwg.mxu0
  %v322 = vmax.f32 %v170, %v317
  %v323 = vmax.f32 %v173, %v320
  %s324 = scalar_lea.vmem %s1, 864
  %v325 = vld [vmem:[%s324] sm:$0xff]
  %v326 = vld [vmem:[%s324 + $0x8] sm:$0xff]
  %v327 = vld [vmem:[%s324 + $0x10] sm:$0xff]
  %v328 = vld [vmem:[%s324 + $0x18] sm:$0xff]
  %v329 = vld [vmem:[%s324 + $0x20] sm:$0xff]
  %v330 = vld [vmem:[%s324 + $0x28] sm:$0xff]
  %v331 = vld [vmem:[%s324 + $0x30] sm:$0xff]
  %v332 = vld [vmem:[%s324 + $0x38] sm:$0xff]
  %v333 = vld [vmem:[%s324 + $0x40] sm:$0xff]
  %v334 = vld [vmem:[%s324 + $0x48] sm:$0xff]
  %v335 = vld [vmem:[%s324 + $0x50] sm:$0xff]
  %v336 = vld [vmem:[%s324 + $0x58] sm:$0xff]
  %v337 = vld [vmem:[%s324 + $0x60] sm:$0xff]
  %v338 = vld [vmem:[%s324 + $0x68] sm:$0xff]
  %v339 = vld [vmem:[%s324 + $0x70] sm:$0xff]
  %v340 = vld [vmem:[%s324 + $0x78] sm:$0xff]
  %v341 = vld [vmem:[%s324 + $0x80] sm:$0xff]
  %v342 = vld [vmem:[%s324 + $0x88] sm:$0xff]
  %v343 = vld [vmem:[%s324 + $0x90] sm:$0xff]
  %v344 = vld [vmem:[%s324 + $0x98] sm:$0xff]
  %v345 = vld [vmem:[%s324 + $0xa0] sm:$0xff]
  %v346 = vld [vmem:[%s324 + $0xa8] sm:$0xff]
  %v347 = vld [vmem:[%s324 + $0xb0] sm:$0xff]
  %v348 = vld [vmem:[%s324 + $0xb8] sm:$0xff]
  %v349 = vld [vmem:[%s324 + $0xc0] sm:$0xff]
  %v350 = vld [vmem:[%s324 + $0xc8] sm:$0xff]
  %v351 = vld [vmem:[%s324 + $0xd0] sm:$0xff]
  %v352 = vld [vmem:[%s324 + $0xd8] sm:$0xff]
  %v353 = vld [vmem:[%s324 + $0xe0] sm:$0xff]
  %v354 = vld [vmem:[%s324 + $0xe8] sm:$0xff]
  %v355 = vld [vmem:[%s324 + $0xf0] sm:$0xff]
  %v356 = vld [vmem:[%s324 + $0xf8] sm:$0xff]
  %v357 = vld [vmem:[%s324 + $0x100] sm:$0xff]
  %v358 = vld [vmem:[%s324 + $0x108] sm:$0xff]
  %v359 = vld [vmem:[%s324 + $0x110] sm:$0xff]
  %v360 = vld [vmem:[%s324 + $0x118] sm:$0xff]
  %v361 = vld [vmem:[%s324 + $0x120] sm:$0xff]
  %v362 = vld [vmem:[%s324 + $0x128] sm:$0xff]
  %v363 = vld [vmem:[%s324 + $0x130] sm:$0xff]
  %v364 = vld [vmem:[%s324 + $0x138] sm:$0xff]
  %v365 = vld [vmem:[%s324 + $0x140] sm:$0xff]
  %v366 = vld [vmem:[%s324 + $0x148] sm:$0xff]
  %v367 = vld [vmem:[%s324 + $0x150] sm:$0xff]
  %v368 = vld [vmem:[%s324 + $0x158] sm:$0xff]
  %v369 = vld [vmem:[%s324 + $0x160] sm:$0xff]
  %v370 = vld [vmem:[%s324 + $0x168] sm:$0xff]
  %v371 = vld [vmem:[%s324 + $0x170] sm:$0xff]
  %v372 = vld [vmem:[%s324 + $0x178] sm:$0xff]
  %v373 = vld [vmem:[%s324 + $0x180] sm:$0xff]
  %v374 = vld [vmem:[%s324 + $0x188] sm:$0xff]
  %v375 = vld [vmem:[%s324 + $0x190] sm:$0xff]
  %v376 = vld [vmem:[%s324 + $0x198] sm:$0xff]
  %v377 = vld [vmem:[%s324 + $0x1a0] sm:$0xff]
  %v378 = vld [vmem:[%s324 + $0x1a8] sm:$0xff]
  %379 = vmatpush.msra.mxu0 %v340
  %380 = vmatpush.msra.mxu0 %v339
  %381 = vmatpush.msra.mxu0 %v338
  %382 = vmatpush.msra.mxu0 %v337
  %383 = vmatpush.msra.mxu0 %v336
  %384 = vmatpush.msra.mxu0 %v335
  %385 = vmatpush.msra.mxu0 %v334
  %386 = vmatpush.msra.mxu0 %v333
  %387 = vmatpush.msra.mxu0 %v332
  %388 = vmatpush.msra.mxu0 %v331
  %389 = vmatpush.msra.mxu0 %v330
  %390 = vmatpush.msra.mxu0 %v329
  %391 = vmatpush.msra.mxu0 %v328
  %392 = vmatpush.msra.mxu0 %v327
  %393 = vmatpush.msra.mxu0 %v326
  %394 = vmatpush.msra.mxu0 %v325
  %395 = vmatmul.f32.gmra.mxu0 %v14
  %v396 = vpop.f32.mrf.mxu0
  %v397 = vadd.f32 0.0, %v396
  %398 = vmatmul.f32.gmra.mxu0 %v18
  %v399 = vpop.f32.mrf.mxu0
  %v400 = vadd.f32 0.0, %v399
  %401 = vdwg.mxu0
  %402 = vmatpush.msra.mxu0 %v356
  %403 = vmatpush.msra.mxu0 %v355
  %404 = vmatpush.msra.mxu0 %v354
  %405 = vmatpush.msra.mxu0 %v353
  %406 = vmatpush.msra.mxu0 %v352
  %407 = vmatpush.msra.mxu0 %v351
  %408 = vmatpush.msra.mxu0 %v350
  %409 = vmatpush.msra.mxu0 %v349
  %410 = vmatpush.msra.mxu0 %v348
  %411 = vmatpush.msra.mxu0 %v347
  %412 = vmatpush.msra.mxu0 %v346
  %413 = vmatpush.msra.mxu0 %v345
  %414 = vmatpush.msra.mxu0 %v344
  %415 = vmatpush.msra.mxu0 %v343
  %416 = vmatpush.msra.mxu0 %v342
  %417 = vmatpush.msra.mxu0 %v341
  %418 = vmatmul.f32.gmra.mxu0 %v15
  %v419 = vpop.f32.mrf.mxu0
  %v420 = vadd.f32 %v397, %v419
  %421 = vmatmul.f32.gmra.mxu0 %v19
  %v422 = vpop.f32.mrf.mxu0
  %v423 = vadd.f32 %v400, %v422
  %424 = vdwg.mxu0
  %425 = vmatpush.msra.mxu0 %v372
  %426 = vmatpush.msra.mxu0 %v371
  %427 = vmatpush.msra.mxu0 %v370
  %428 = vmatpush.msra.mxu0 %v369
  %429 = vmatpush.msra.mxu0 %v368
  %430 = vmatpush.msra.mxu0 %v367
  %431 = vmatpush.msra.mxu0 %v366
  %432 = vmatpush.msra.mxu0 %v365
  %433 = vmatpush.msra.mxu0 %v364
  %434 = vmatpush.msra.mxu0 %v363
  %435 = vmatpush.msra.mxu0 %v362
  %436 = vmatpush.msra.mxu0 %v361
  %437 = vmatpush.msra.mxu0 %v360
  %438 = vmatpush.msra.mxu0 %v359
  %439 = vmatpush.msra.mxu0 %v358
  %440 = vmatpush.msra.mxu0 %v357
  %441 = vmatmul.f32.gmra.mxu0 %v16
  %v442 = vpop.f32.mrf.mxu0
  %v443 = vadd.f32 %v420, %v442
  %444 = vmatmul.f32.gmra.mxu0 %v20
  %v445 = vpop.f32.mrf.mxu0
  %v446 = vadd.f32 %v423, %v445
  %447 = vdwg.mxu0
  %448 = vmatpush.msra.mxu0 0.0
  %449 = vmatpush.msra.mxu0 0.0
  %450 = vmatpush.msra.mxu0 0.0
  %451 = vmatpush.msra.mxu0 0.0
  %452 = vmatpush.msra.mxu0 0.0
  %453 = vmatpush.msra.mxu0 0.0
  %454 = vmatpush.msra.mxu0 0.0
  %455 = vmatpush.msra.mxu0 0.0
  %456 = vmatpush.msra.mxu0 0.0
  %457 = vmatpush.msra.mxu0 0.0
  %458 = vmatpush.msra.mxu0 %v378
  %459 = vmatpush.msra.mxu0 %v377
  %460 = vmatpush.msra.mxu0 %v376
  %461 = vmatpush.msra.mxu0 %v375
  %462 = vmatpush.msra.mxu0 %v374
  %463 = vmatpush.msra.mxu0 %v373
  %464 = vmatmul.f32.gmra.mxu0 %v78
  %v465 = vpop.f32.mrf.mxu0
  %v466 = vadd.f32 %v443, %v465
  %467 = vmatmul.f32.gmra.mxu0 %v81
  %v468 = vpop.f32.mrf.mxu0
  %v469 = vadd.f32 %v446, %v468
  %470 = vdwg.mxu0
  %v471 = vmax.f32 %v322, %v466
  %v472 = vmax.f32 %v323, %v469
  %s473 = scalar_lea.vmem %s1, 1296
  %v474 = vld [vmem:[%s473] sm:$0xff]
  %v475 = vld [vmem:[%s473 + $0x8] sm:$0xff]
  %v476 = vld [vmem:[%s473 + $0x10] sm:$0xff]
  %v477 = vld [vmem:[%s473 + $0x18] sm:$0xff]
  %v478 = vld [vmem:[%s473 + $0x20] sm:$0xff]
  %v479 = vld [vmem:[%s473 + $0x28] sm:$0xff]
  %v480 = vld [vmem:[%s473 + $0x30] sm:$0xff]
  %v481 = vld [vmem:[%s473 + $0x38] sm:$0xff]
  %v482 = vld [vmem:[%s473 + $0x40] sm:$0xff]
  %v483 = vld [vmem:[%s473 + $0x48] sm:$0xff]
  %v484 = vld [vmem:[%s473 + $0x50] sm:$0xff]
  %v485 = vld [vmem:[%s473 + $0x58] sm:$0xff]
  %v486 = vld [vmem:[%s473 + $0x60] sm:$0xff]
  %v487 = vld [vmem:[%s473 + $0x68] sm:$0xff]
  %v488 = vld [vmem:[%s473 + $0x70] sm:$0xff]
  %v489 = vld [vmem:[%s473 + $0x78] sm:$0xff]
  %v490 = vld [vmem:[%s473 + $0x80] sm:$0xff]
  %v491 = vld [vmem:[%s473 + $0x88] sm:$0xff]
  %v492 = vld [vmem:[%s473 + $0x90] sm:$0xff]
  %v493 = vld [vmem:[%s473 + $0x98] sm:$0xff]
  %v494 = vld [vmem:[%s473 + $0xa0] sm:$0xff]
  %v495 = vld [vmem:[%s473 + $0xa8] sm:$0xff]
  %v496 = vld [vmem:[%s473 + $0xb0] sm:$0xff]
  %v497 = vld [vmem:[%s473 + $0xb8] sm:$0xff]
  %v498 = vld [vmem:[%s473 + $0xc0] sm:$0xff]
  %v499 = vld [vmem:[%s473 + $0xc8] sm:$0xff]
  %v500 = vld [vmem:[%s473 + $0xd0] sm:$0xff]
  %v501 = vld [vmem:[%s473 + $0xd8] sm:$0xff]
  %v502 = vld [vmem:[%s473 + $0xe0] sm:$0xff]
  %v503 = vld [vmem:[%s473 + $0xe8] sm:$0xff]
  %v504 = vld [vmem:[%s473 + $0xf0] sm:$0xff]
  %v505 = vld [vmem:[%s473 + $0xf8] sm:$0xff]
  %v506 = vld [vmem:[%s473 + $0x100] sm:$0xff]
  %v507 = vld [vmem:[%s473 + $0x108] sm:$0xff]
  %v508 = vld [vmem:[%s473 + $0x110] sm:$0xff]
  %v509 = vld [vmem:[%s473 + $0x118] sm:$0xff]
  %v510 = vld [vmem:[%s473 + $0x120] sm:$0xff]
  %v511 = vld [vmem:[%s473 + $0x128] sm:$0xff]
  %v512 = vld [vmem:[%s473 + $0x130] sm:$0xff]
  %v513 = vld [vmem:[%s473 + $0x138] sm:$0xff]
  %v514 = vld [vmem:[%s473 + $0x140] sm:$0xff]
  %v515 = vld [vmem:[%s473 + $0x148] sm:$0xff]
  %v516 = vld [vmem:[%s473 + $0x150] sm:$0xff]
  %v517 = vld [vmem:[%s473 + $0x158] sm:$0xff]
  %v518 = vld [vmem:[%s473 + $0x160] sm:$0xff]
  %v519 = vld [vmem:[%s473 + $0x168] sm:$0xff]
  %v520 = vld [vmem:[%s473 + $0x170] sm:$0xff]
  %v521 = vld [vmem:[%s473 + $0x178] sm:$0xff]
  %v522 = vld [vmem:[%s473 + $0x180] sm:$0xff]
  %v523 = vld [vmem:[%s473 + $0x188] sm:$0xff]
  %v524 = vld [vmem:[%s473 + $0x190] sm:$0xff]
  %v525 = vld [vmem:[%s473 + $0x198] sm:$0xff]
  %v526 = vld [vmem:[%s473 + $0x1a0] sm:$0xff]
  %v527 = vld [vmem:[%s473 + $0x1a8] sm:$0xff]
  %528 = vmatpush.msra.mxu0 %v489
  %529 = vmatpush.msra.mxu0 %v488
  %530 = vmatpush.msra.mxu0 %v487
  %531 = vmatpush.msra.mxu0 %v486
  %532 = vmatpush.msra.mxu0 %v485
  %533 = vmatpush.msra.mxu0 %v484
  %534 = vmatpush.msra.mxu0 %v483
  %535 = vmatpush.msra.mxu0 %v482
  %536 = vmatpush.msra.mxu0 %v481
  %537 = vmatpush.msra.mxu0 %v480
  %538 = vmatpush.msra.mxu0 %v479
  %539 = vmatpush.msra.mxu0 %v478
  %540 = vmatpush.msra.mxu0 %v477
  %541 = vmatpush.msra.mxu0 %v476
  %542 = vmatpush.msra.mxu0 %v475
  %543 = vmatpush.msra.mxu0 %v474
  %544 = vmatmul.f32.gmra.mxu0 %v14
  %v545 = vpop.f32.mrf.mxu0
  %v546 = vadd.f32 0.0, %v545
  %547 = vmatmul.f32.gmra.mxu0 %v18
  %v548 = vpop.f32.mrf.mxu0
  %v549 = vadd.f32 0.0, %v548
  %550 = vdwg.mxu0
  %551 = vmatpush.msra.mxu0 %v505
  %552 = vmatpush.msra.mxu0 %v504
  %553 = vmatpush.msra.mxu0 %v503
  %554 = vmatpush.msra.mxu0 %v502
  %555 = vmatpush.msra.mxu0 %v501
  %556 = vmatpush.msra.mxu0 %v500
  %557 = vmatpush.msra.mxu0 %v499
  %558 = vmatpush.msra.mxu0 %v498
  %559 = vmatpush.msra.mxu0 %v497
  %560 = vmatpush.msra.mxu0 %v496
  %561 = vmatpush.msra.mxu0 %v495
  %562 = vmatpush.msra.mxu0 %v494
  %563 = vmatpush.msra.mxu0 %v493
  %564 = vmatpush.msra.mxu0 %v492
  %565 = vmatpush.msra.mxu0 %v491
  %566 = vmatpush.msra.mxu0 %v490
  %567 = vmatmul.f32.gmra.mxu0 %v15
  %v568 = vpop.f32.mrf.mxu0
  %v569 = vadd.f32 %v546, %v568
  %570 = vmatmul.f32.gmra.mxu0 %v19
  %v571 = vpop.f32.mrf.mxu0
  %v572 = vadd.f32 %v549, %v571
  %573 = vdwg.mxu0
  %574 = vmatpush.msra.mxu0 %v521
  %575 = vmatpush.msra.mxu0 %v520
  %576 = vmatpush.msra.mxu0 %v519
  %577 = vmatpush.msra.mxu0 %v518
  %578 = vmatpush.msra.mxu0 %v517
  %579 = vmatpush.msra.mxu0 %v516
  %580 = vmatpush.msra.mxu0 %v515
  %581 = vmatpush.msra.mxu0 %v514
  %582 = vmatpush.msra.mxu0 %v513
  %583 = vmatpush.msra.mxu0 %v512
  %584 = vmatpush.msra.mxu0 %v511
  %585 = vmatpush.msra.mxu0 %v510
  %586 = vmatpush.msra.mxu0 %v509
  %587 = vmatpush.msra.mxu0 %v508
  %588 = vmatpush.msra.mxu0 %v507
  %589 = vmatpush.msra.mxu0 %v506
  %590 = vmatmul.f32.gmra.mxu0 %v16
  %v591 = vpop.f32.mrf.mxu0
  %v592 = vadd.f32 %v569, %v591
  %593 = vmatmul.f32.gmra.mxu0 %v20
  %v594 = vpop.f32.mrf.mxu0
  %v595 = vadd.f32 %v572, %v594
  %596 = vdwg.mxu0
  %597 = vmatpush.msra.mxu0 0.0
  %598 = vmatpush.msra.mxu0 0.0
  %599 = vmatpush.msra.mxu0 0.0
  %600 = vmatpush.msra.mxu0 0.0
  %601 = vmatpush.msra.mxu0 0.0
  %602 = vmatpush.msra.mxu0 0.0
  %603 = vmatpush.msra.mxu0 0.0
  %604 = vmatpush.msra.mxu0 0.0
  %605 = vmatpush.msra.mxu0 0.0
  %606 = vmatpush.msra.mxu0 0.0
  %607 = vmatpush.msra.mxu0 %v527
  %608 = vmatpush.msra.mxu0 %v526
  %609 = vmatpush.msra.mxu0 %v525
  %610 = vmatpush.msra.mxu0 %v524
  %611 = vmatpush.msra.mxu0 %v523
  %612 = vmatpush.msra.mxu0 %v522
  %613 = vmatmul.f32.gmra.mxu0 %v78
  %v614 = vpop.f32.mrf.mxu0
  %v615 = vadd.f32 %v592, %v614
  %616 = vmatmul.f32.gmra.mxu0 %v81
  %v617 = vpop.f32.mrf.mxu0
  %v618 = vadd.f32 %v595, %v617
  %619 = vdwg.mxu0
  %v620 = vmax.f32 %v471, %v615
  %v621 = vmax.f32 %v472, %v618
  %v622 = vld [vmem:[%s2] sm:$0xff]
  %v623 = vld [vmem:[%s2 + $0x8] sm:$0xff]
  %625 = vset.pattern.permute.xlu0 0
  %626 = vperm.xlu0 %625, %v622
  %v627 = vpop.permute.xlu0 %626
  %630 = vset.pattern.permute.xlu0 0
  %631 = vperm.xlu0 %630, %v623
  %v632 = vpop.permute.xlu0 %631
  %v634 = vadd.f32 %v620, %v627
  %v635 = vadd.f32 %v621, %v632
  %v636 = vmax.f32 %v634, 0.0
  %v637 = vmax.f32 %v635, 0.0
  %vm638 = vcmask 31744
  %639 = vst.msk [vmem:[%s3] sm:$0xff] %vm638, %v636
  %640 = vst.msk [vmem:[%s3 + $0x8] sm:$0xff] %vm638, %v637
  // Predicated region
  $region14: #{discriminator_forward.7} parent=0 // pred_check
    _
  $region15: #{discriminator_forward.7} parent=0 // pred_check_branch
    %642 = sbr.rel (0) target = $region17
  $region16: #{discriminator_forward.7} parent=0 // pred_region
    _
  $region17: #{discriminator_forward.7} parent=0 // pred_fallthru
    _
  // Predicated region
  $region18: #{discriminator_forward.7} parent=0 // pred_check
    _
  $region19: #{discriminator_forward.7} parent=0 // pred_check_branch
    %644 = sbr.rel (0) target = $region21
  $region20: #{discriminator_forward.7} parent=0 // pred_region
    _
  $region21: #{discriminator_forward.7} parent=0 // pred_fallthru
    _

// kernel: discriminator_forward.9
$region0: #{discriminator_forward.9}
  #allocation0 [shape = 'u32[]', space=smem, size = 0x4, offset = 0x4, fixed_abs, tag = 'smem constant byte address 0x4 - core index']
  #allocation1 [shape = 'u32[72,128]{1,0:T(1,128)}', space=vmem, size = 0x9000, scoped, tag = 'internal scratch']
  %s0 = inlined_call_operand.vmem [shape: f32[8,16], index: 0, kind: input, shape index: {}]
  %s1 = inlined_call_operand.vmem [shape: f32[16,128], index: 1, kind: input, shape index: {}]
  %s2 = inlined_call_operand.vmem [shape: f32[1,128], index: 2, kind: input, shape index: {}]
  %s3 = inlined_call_operand.vmem [shape: f32[128,128], index: 3, kind: input, shape index: {}]
  %s4 = inlined_call_operand.vmem [shape: f32[1,128], index: 4, kind: input, shape index: {}]
  %s5 = inlined_call_operand.vmem [shape: f32[128,128], index: 5, kind: input, shape index: {}]
  %s6 = inlined_call_operand.vmem [shape: f32[1,128], index: 6, kind: input, shape index: {}]
  %s7 = inlined_call_operand.vmem [shape: f32[8,128], index: 7, kind: output, shape index: {}]
  %s8 = sld [smem:[#allocation0]]
  $region38: #{discriminator_forward.9} parent=0
    _
  %s10 = ssub.s32 1, %s8
  %s11 = scalar_select 0, %s10, %s8
  // Predicated region
  $region2: #{discriminator_forward.9} parent=0 // pred_check
    _
  $region3: #{discriminator_forward.9} parent=0 // pred_check_branch
    %13 = sbr.rel (0) target = $region5
  $region4: #{discriminator_forward.9} parent=0 // pred_region
    _
  $region5: #{discriminator_forward.9} parent=0 // pred_fallthru
    _
  // Predicated region
  $region6: #{discriminator_forward.9} parent=0 // pred_check
    _
  $region7: #{discriminator_forward.9} parent=0 // pred_check_branch
    %15 = sbr.rel (0) target = $region9
  $region8: #{discriminator_forward.9} parent=0 // pred_region
    _
  $region9: #{discriminator_forward.9} parent=0 // pred_fallthru
    _
  // Predicated region
  $region10: #{discriminator_forward.9} parent=0 // pred_check
    _
  $region11: #{discriminator_forward.9} parent=0 // pred_check_branch
    %17 = sbr.rel (0) target = $region13
  $region12: #{discriminator_forward.9} parent=0 // pred_region
    _
  $region13: #{discriminator_forward.9} parent=0 // pred_fallthru
    _
  // Predicated region
  $region14: #{discriminator_forward.9} parent=0 // pred_check
    _
  $region15: #{discriminator_forward.9} parent=0 // pred_check_branch
    %19 = sbr.rel (0) target = $region17
  $region16: #{discriminator_forward.9} parent=0 // pred_region
    _
  $region17: #{discriminator_forward.9} parent=0 // pred_fallthru
    _
  // Predicated region
  $region18: #{discriminator_forward.9} parent=0 // pred_check
    _
  $region19: #{discriminator_forward.9} parent=0 // pred_check_branch
    %21 = sbr.rel (0) target = $region21
  $region20: #{discriminator_forward.9} parent=0 // pred_region
    _
  $region21: #{discriminator_forward.9} parent=0 // pred_fallthru
    _
  // Predicated region
  $region22: #{discriminator_forward.9} parent=0 // pred_check
    _
  $region23: #{discriminator_forward.9} parent=0 // pred_check_branch
    %23 = sbr.rel (0) target = $region25
  $region24: #{discriminator_forward.9} parent=0 // pred_region
    _
  $region25: #{discriminator_forward.9} parent=0 // pred_fallthru
    _
  // Predicated region
  $region26: #{discriminator_forward.9} parent=0 // pred_check
    _
  $region27: #{discriminator_forward.9} parent=0 // pred_check_branch
    %25 = sbr.rel (0) target = $region29
  $region28: #{discriminator_forward.9} parent=0 // pred_region
    _
  $region29: #{discriminator_forward.9} parent=0 // pred_fallthru
    _
  %v26 = vld [vmem:[%s0] sm:$0xff]
  %v27 = vld [vmem:[%s1] sm:$0xff]
  %v28 = vld [vmem:[%s1 + $0x8] sm:$0xff]
  %v29 = vld [vmem:[%s2] sm:$0x1]
  %v31 = vperm.slane %v29, 0
  %vm33 = vcmask 130048
  %v35 = vsel %vm33, %v26, 0
  %37 = vmatpush.msra.mxu0 0.0
  %38 = vmatpush.msra.mxu0 0.0
  %39 = vmatpush.msra.mxu0 0.0
  %40 = vmatpush.msra.mxu0 0.0
  %41 = vmatpush.msra.mxu0 0.0
  %42 = vmatpush.msra.mxu0 0.0
  %43 = vmatpush.msra.mxu0 0.0
  %44 = vmatpush.msra.mxu0 0.0
  %45 = vmatpush.msra.mxu0 0.0
  %46 = vmatpush.msra.mxu0 0.0
  %47 = vmatpush.msra.mxu0 0.0
  %48 = vmatpush.msra.mxu0 0.0
  %49 = vmatpush.msra.mxu0 0.0
  %50 = vmatpush.msra.mxu0 0.0
  %51 = vmatpush.msra.mxu0 %v28
  %52 = vmatpush.msra.mxu0 %v27
  %53 = vmatmul.f32.gmra.mxu0 %v35
  %v54 = vpop.f32.mrf.mxu0
  %v55 = vadd.f32 %v31, %v54
  %56 = vdwg.mxu0
  %v57 = vmax.f32 %v55, 0.0
  %v58 = vld [vmem:[%s3] sm:$0xff]
  %v59 = vld [vmem:[%s3 + $0x8] sm:$0xff]
  %v60 = vld [vmem:[%s3 + $0x10] sm:$0xff]
  %v61 = vld [vmem:[%s3 + $0x18] sm:$0xff]
  %v62 = vld [vmem:[%s3 + $0x20] sm:$0xff]
  %v63 = vld [vmem:[%s3 + $0x28] sm:$0xff]
  %v64 = vld [vmem:[%s3 + $0x30] sm:$0xff]
  %v65 = vld [vmem:[%s3 + $0x38] sm:$0xff]
  %v66 = vld [vmem:[%s3 + $0x40] sm:$0xff]
  %v67 = vld [vmem:[%s3 + $0x48] sm:$0xff]
  %v68 = vld [vmem:[%s3 + $0x50] sm:$0xff]
  %v69 = vld [vmem:[%s3 + $0x58] sm:$0xff]
  %v70 = vld [vmem:[%s3 + $0x60] sm:$0xff]
  %v71 = vld [vmem:[%s3 + $0x68] sm:$0xff]
  %v72 = vld [vmem:[%s3 + $0x70] sm:$0xff]
  %v73 = vld [vmem:[%s3 + $0x78] sm:$0xff]
  %v74 = vld [vmem:[%s4] sm:$0x1]
  %v76 = vperm.slane %v74, 0
  %78 = vmatpush.msra.mxu0 %v73
  %79 = vmatpush.msra.mxu0 %v72
  %80 = vmatpush.msra.mxu0 %v71
  %81 = vmatpush.msra.mxu0 %v70
  %82 = vmatpush.msra.mxu0 %v69
  %83 = vmatpush.msra.mxu0 %v68
  %84 = vmatpush.msra.mxu0 %v67
  %85 = vmatpush.msra.mxu0 %v66
  %86 = vmatpush.msra.mxu0 %v65
  %87 = vmatpush.msra.mxu0 %v64
  %88 = vmatpush.msra.mxu0 %v63
  %89 = vmatpush.msra.mxu0 %v62
  %90 = vmatpush.msra.mxu0 %v61
  %91 = vmatpush.msra.mxu0 %v60
  %92 = vmatpush.msra.mxu0 %v59
  %93 = vmatpush.msra.mxu0 %v58
  %94 = vmatmul.f32.gmra.mxu0 %v57
  %v95 = vpop.f32.mrf.mxu0
  %v96 = vadd.f32 %v76, %v95
  %97 = vdwg.mxu0
  %v98 = vmax.f32 %v96, 0.0
  %v99 = vld [vmem:[%s5] sm:$0xff]
  %v100 = vld [vmem:[%s5 + $0x8] sm:$0xff]
  %v101 = vld [vmem:[%s5 + $0x10] sm:$0xff]
  %v102 = vld [vmem:[%s5 + $0x18] sm:$0xff]
  %v103 = vld [vmem:[%s5 + $0x20] sm:$0xff]
  %v104 = vld [vmem:[%s5 + $0x28] sm:$0xff]
  %v105 = vld [vmem:[%s5 + $0x30] sm:$0xff]
  %v106 = vld [vmem:[%s5 + $0x38] sm:$0xff]
  %v107 = vld [vmem:[%s5 + $0x40] sm:$0xff]
  %v108 = vld [vmem:[%s5 + $0x48] sm:$0xff]
  %v109 = vld [vmem:[%s5 + $0x50] sm:$0xff]
  %v110 = vld [vmem:[%s5 + $0x58] sm:$0xff]
  %v111 = vld [vmem:[%s5 + $0x60] sm:$0xff]
  %v112 = vld [vmem:[%s5 + $0x68] sm:$0xff]
  %v113 = vld [vmem:[%s5 + $0x70] sm:$0xff]
  %v114 = vld [vmem:[%s5 + $0x78] sm:$0xff]
  %v115 = vld [vmem:[%s6] sm:$0x1]
  %v117 = vperm.slane %v115, 0
  %119 = vmatpush.msra.mxu0 %v114
  %120 = vmatpush.msra.mxu0 %v113
  %121 = vmatpush.msra.mxu0 %v112
  %122 = vmatpush.msra.mxu0 %v111
  %123 = vmatpush.msra.mxu0 %v110
  %124 = vmatpush.msra.mxu0 %v109
  %125 = vmatpush.msra.mxu0 %v108
  %126 = vmatpush.msra.mxu0 %v107
  %127 = vmatpush.msra.mxu0 %v106
  %128 = vmatpush.msra.mxu0 %v105
  %129 = vmatpush.msra.mxu0 %v104
  %130 = vmatpush.msra.mxu0 %v103
  %131 = vmatpush.msra.mxu0 %v102
  %132 = vmatpush.msra.mxu0 %v101
  %133 = vmatpush.msra.mxu0 %v100
  %134 = vmatpush.msra.mxu0 %v99
  %135 = vmatmul.f32.gmra.mxu0 %v98
  %v136 = vpop.f32.mrf.mxu0
  %v137 = vadd.f32 %v117, %v136
  %138 = vdwg.mxu0
  %v139 = vxor.u32 %v137, 2147483648
  %v140 = vmul.f32 %v139, 1.442695
  %v141 = vpow.pop %v140
  %v142 = vadd.f32 %v141, 1.0
  %v143 = vrcp.pop %v142
  %v144 = vmul.f32 %v142, %v143
  %v145 = vsub.f32 1.0, %v144
  %v146 = vmul.f32 %v143, %v145
  %v147 = vadd.f32 %v143, %v146
  %vm148 = vweird.f32 %v142
  %vm149 = vweird.f32 %v143
  %vm150 = vmor %vm148, %vm149
  %v151 = vsel %vm150, %v143, %v147
  %v152 = vand.u32 2147483647, %v142
  %vm153 = vcmp.eq.f32.partialorder %v152, 8.507059e+37
  %v154 = vand.u32 %v142, 2147483648
  %v155 = vor.u32 1.1754944e-38, %v154
  %v156 = vsel %vm153, %v155, %v151
  %v157 = vmul.f32 1.0, %v156
  %158 = vst [vmem:[%s7] sm:$0xff] %v157
  // Predicated region
  $region30: #{discriminator_forward.9} parent=0 // pred_check
    _
  $region31: #{discriminator_forward.9} parent=0 // pred_check_branch
    %160 = sbr.rel (0) target = $region33
  $region32: #{discriminator_forward.9} parent=0 // pred_region
    _
  $region33: #{discriminator_forward.9} parent=0 // pred_fallthru
    _
  // Predicated region
  $region34: #{discriminator_forward.9} parent=0 // pred_check
    _
  $region35: #{discriminator_forward.9} parent=0 // pred_check_branch
    %162 = sbr.rel (0) target = $region37
  $region36: #{discriminator_forward.9} parent=0 // pred_region
    _
  $region37: #{discriminator_forward.9} parent=0 // pred_fallthru
    _

// kernel: discriminator_forward.8
$region0: #{discriminator_forward.8}
  #allocation0 [shape = 'u32[]', space=smem, size = 0x4, offset = 0x4, fixed_abs, tag = 'smem constant byte address 0x4 - core index']
  #allocation1 [shape = 'u32[72,128]{1,0:T(1,128)}', space=vmem, size = 0x9000, scoped, tag = 'internal scratch']
  %s0 = inlined_call_operand.vmem [shape: f32[16,432], index: 0, kind: input, shape index: {}]
  %s1 = inlined_call_operand.vmem [shape: f32[1,432,2], index: 1, kind: input, shape index: {}]
  %s2 = inlined_call_operand.vmem [shape: f32[16,1], index: 2, kind: input, shape index: {}]
  %s3 = inlined_call_operand.vmem [shape: f32[16,2], index: 3, kind: output, shape index: {}]
  %s4 = sld [smem:[#allocation0]]
  $region22: #{discriminator_forward.8} parent=0
    _
  %s6 = ssub.s32 1, %s4
  %s7 = scalar_select 0, %s6, %s4
  // Predicated region
  $region2: #{discriminator_forward.8} parent=0 // pred_check
    _
  $region3: #{discriminator_forward.8} parent=0 // pred_check_branch
    %9 = sbr.rel (0) target = $region5
  $region4: #{discriminator_forward.8} parent=0 // pred_region
    _
  $region5: #{discriminator_forward.8} parent=0 // pred_fallthru
    _
  // Predicated region
  $region6: #{discriminator_forward.8} parent=0 // pred_check
    _
  $region7: #{discriminator_forward.8} parent=0 // pred_check_branch
    %11 = sbr.rel (0) target = $region9
  $region8: #{discriminator_forward.8} parent=0 // pred_region
    _
  $region9: #{discriminator_forward.8} parent=0 // pred_fallthru
    _
  // Predicated region
  $region10: #{discriminator_forward.8} parent=0 // pred_check
    _
  $region11: #{discriminator_forward.8} parent=0 // pred_check_branch
    %13 = sbr.rel (0) target = $region13
  $region12: #{discriminator_forward.8} parent=0 // pred_region
    _
  $region13: #{discriminator_forward.8} parent=0 // pred_fallthru
    _
  %v14 = vld [vmem:[%s0] sm:$0xff]
  %v15 = vld [vmem:[%s0 + $0x8] sm:$0xff]
  %v16 = vld [vmem:[%s0 + $0x10] sm:$0xff]
  %v17 = vld [vmem:[%s0 + $0x18] sm:$0xff]
  %v18 = vld [vmem:[%s0 + $0x20] sm:$0xff]
  %v19 = vld [vmem:[%s0 + $0x28] sm:$0xff]
  %v20 = vld [vmem:[%s0 + $0x30] sm:$0xff]
  %v21 = vld [vmem:[%s0 + $0x38] sm:$0xff]
  %v22 = vld [vmem:[%s1] sm:$0xff]
  %v23 = vld [vmem:[%s1 + $0x8] sm:$0xff]
  %v24 = vld [vmem:[%s1 + $0x10] sm:$0xff]
  %v25 = vld [vmem:[%s1 + $0x18] sm:$0xff]
  %v26 = vld [vmem:[%s1 + $0x20] sm:$0xff]
  %v27 = vld [vmem:[%s1 + $0x28] sm:$0xff]
  %v28 = vld [vmem:[%s1 + $0x30] sm:$0xff]
  %v29 = vld [vmem:[%s1 + $0x38] sm:$0xff]
  %v30 = vld [vmem:[%s1 + $0x40] sm:$0xff]
  %v31 = vld [vmem:[%s1 + $0x48] sm:$0xff]
  %v32 = vld [vmem:[%s1 + $0x50] sm:$0xff]
  %v33 = vld [vmem:[%s1 + $0x58] sm:$0xff]
  %v34 = vld [vmem:[%s1 + $0x60] sm:$0xff]
  %v35 = vld [vmem:[%s1 + $0x68] sm:$0xff]
  %v36 = vld [vmem:[%s1 + $0x70] sm:$0xff]
  %v37 = vld [vmem:[%s1 + $0x78] sm:$0xff]
  %v38 = vld [vmem:[%s1 + $0x80] sm:$0xff]
  %v39 = vld [vmem:[%s1 + $0x88] sm:$0xff]
  %v40 = vld [vmem:[%s1 + $0x90] sm:$0xff]
  %v41 = vld [vmem:[%s1 + $0x98] sm:$0xff]
  %v42 = vld [vmem:[%s1 + $0xa0] sm:$0xff]
  %v43 = vld [vmem:[%s1 + $0xa8] sm:$0xff]
  %v44 = vld [vmem:[%s1 + $0xb0] sm:$0xff]
  %v45 = vld [vmem:[%s1 + $0xb8] sm:$0xff]
  %v46 = vld [vmem:[%s1 + $0xc0] sm:$0xff]
  %v47 = vld [vmem:[%s1 + $0xc8] sm:$0xff]
  %v48 = vld [vmem:[%s1 + $0xd0] sm:$0xff]
  %v49 = vld [vmem:[%s1 + $0xd8] sm:$0xff]
  %v50 = vld [vmem:[%s1 + $0xe0] sm:$0xff]
  %v51 = vld [vmem:[%s1 + $0xe8] sm:$0xff]
  %v52 = vld [vmem:[%s1 + $0xf0] sm:$0xff]
  %v53 = vld [vmem:[%s1 + $0xf8] sm:$0xff]
  %v54 = vld [vmem:[%s1 + $0x100] sm:$0xff]
  %v55 = vld [vmem:[%s1 + $0x108] sm:$0xff]
  %v56 = vld [vmem:[%s1 + $0x110] sm:$0xff]
  %v57 = vld [vmem:[%s1 + $0x118] sm:$0xff]
  %v58 = vld [vmem:[%s1 + $0x120] sm:$0xff]
  %v59 = vld [vmem:[%s1 + $0x128] sm:$0xff]
  %v60 = vld [vmem:[%s1 + $0x130] sm:$0xff]
  %v61 = vld [vmem:[%s1 + $0x138] sm:$0xff]
  %v62 = vld [vmem:[%s1 + $0x140] sm:$0xff]
  %v63 = vld [vmem:[%s1 + $0x148] sm:$0xff]
  %v64 = vld [vmem:[%s1 + $0x150] sm:$0xff]
  %v65 = vld [vmem:[%s1 + $0x158] sm:$0xff]
  %v66 = vld [vmem:[%s1 + $0x160] sm:$0xff]
  %v67 = vld [vmem:[%s1 + $0x168] sm:$0xff]
  %v68 = vld [vmem:[%s1 + $0x170] sm:$0xff]
  %v69 = vld [vmem:[%s1 + $0x178] sm:$0xff]
  %v70 = vld [vmem:[%s1 + $0x180] sm:$0xff]
  %v71 = vld [vmem:[%s1 + $0x188] sm:$0xff]
  %v72 = vld [vmem:[%s1 + $0x190] sm:$0xff]
  %v73 = vld [vmem:[%s1 + $0x198] sm:$0xff]
  %v74 = vld [vmem:[%s1 + $0x1a0] sm:$0xff]
  %v75 = vld [vmem:[%s1 + $0x1a8] sm:$0xff]
  %v76 = vld [vmem:[%s2] sm:$0xff]
  %v77 = vld [vmem:[%s2 + $0x8] sm:$0xff]
  %79 = vset.pattern.permute.xlu0 0
  %80 = vperm.xlu0 %79, %v76
  %v81 = vpop.permute.xlu0 %80
  %84 = vset.pattern.permute.xlu0 0
  %85 = vperm.xlu0 %84, %v77
  %v86 = vpop.permute.xlu0 %85
  %vm88 = vcmask 392192
  %v90 = vsel %vm88, %v17, 0
  %v93 = vsel %vm88, %v21, 0
  %95 = vmatpush.msra.mxu0 %v37
  %96 = vmatpush.msra.mxu0 %v36
  %97 = vmatpush.msra.mxu0 %v35
  %98 = vmatpush.msra.mxu0 %v34
  %99 = vmatpush.msra.mxu0 %v33
  %100 = vmatpush.msra.mxu0 %v32
  %101 = vmatpush.msra.mxu0 %v31
  %102 = vmatpush.msra.mxu0 %v30
  %103 = vmatpush.msra.mxu0 %v29
  %104 = vmatpush.msra.mxu0 %v28
  %105 = vmatpush.msra.mxu0 %v27
  %106 = vmatpush.msra.mxu0 %v26
  %107 = vmatpush.msra.mxu0 %v25
  %108 = vmatpush.msra.mxu0 %v24
  %109 = vmatpush.msra.mxu0 %v23
  %110 = vmatpush.msra.mxu0 %v22
  %111 = vmatmul.f32.gmra.mxu0 %v14
  %v112 = vpop.f32.mrf.mxu0
  %v113 = vadd.f32 %v81, %v112
  %114 = vmatmul.f32.gmra.mxu0 %v18
  %v115 = vpop.f32.mrf.mxu0
  %v116 = vadd.f32 %v86, %v115
  %117 = vdwg.mxu0
  %118 = vmatpush.msra.mxu0 %v53
  %119 = vmatpush.msra.mxu0 %v52
  %120 = vmatpush.msra.mxu0 %v51
  %121 = vmatpush.msra.mxu0 %v50
  %122 = vmatpush.msra.mxu0 %v49
  %123 = vmatpush.msra.mxu0 %v48
  %124 = vmatpush.msra.mxu0 %v47
  %125 = vmatpush.msra.mxu0 %v46
  %126 = vmatpush.msra.mxu0 %v45
  %127 = vmatpush.msra.mxu0 %v44
  %128 = vmatpush.msra.mxu0 %v43
  %129 = vmatpush.msra.mxu0 %v42
  %130 = vmatpush.msra.mxu0 %v41
  %131 = vmatpush.msra.mxu0 %v40
  %132 = vmatpush.msra.mxu0 %v39
  %133 = vmatpush.msra.mxu0 %v38
  %134 = vmatmul.f32.gmra.mxu0 %v15
  %v135 = vpop.f32.mrf.mxu0
  %v136 = vadd.f32 %v113, %v135
  %137 = vmatmul.f32.gmra.mxu0 %v19
  %v138 = vpop.f32.mrf.mxu0
  %v139 = vadd.f32 %v116, %v138
  %140 = vdwg.mxu0
  %141 = vmatpush.msra.mxu0 %v69
  %142 = vmatpush.msra.mxu0 %v68
  %143 = vmatpush.msra.mxu0 %v67
  %144 = vmatpush.msra.mxu0 %v66
  %145 = vmatpush.msra.mxu0 %v65
  %146 = vmatpush.msra.mxu0 %v64
  %147 = vmatpush.msra.mxu0 %v63
  %148 = vmatpush.msra.mxu0 %v62
  %149 = vmatpush.msra.mxu0 %v61
  %150 = vmatpush.msra.mxu0 %v60
  %151 = vmatpush.msra.mxu0 %v59
  %152 = vmatpush.msra.mxu0 %v58
  %153 = vmatpush.msra.mxu0 %v57
  %154 = vmatpush.msra.mxu0 %v56
  %155 = vmatpush.msra.mxu0 %v55
  %156 = vmatpush.msra.mxu0 %v54
  %157 = vmatmul.f32.gmra.mxu0 %v16
  %v158 = vpop.f32.mrf.mxu0
  %v159 = vadd.f32 %v136, %v158
  %160 = vmatmul.f32.gmra.mxu0 %v20
  %v161 = vpop.f32.mrf.mxu0
  %v162 = vadd.f32 %v139, %v161
  %163 = vdwg.mxu0
  %164 = vmatpush.msra.mxu0 0.0
  %165 = vmatpush.msra.mxu0 0.0
  %166 = vmatpush.msra.mxu0 0.0
  %167 = vmatpush.msra.mxu0 0.0
  %168 = vmatpush.msra.mxu0 0.0
  %169 = vmatpush.msra.mxu0 0.0
  %170 = vmatpush.msra.mxu0 0.0
  %171 = vmatpush.msra.mxu0 0.0
  %172 = vmatpush.msra.mxu0 0.0
  %173 = vmatpush.msra.mxu0 0.0
  %174 = vmatpush.msra.mxu0 %v75
  %175 = vmatpush.msra.mxu0 %v74
  %176 = vmatpush.msra.mxu0 %v73
  %177 = vmatpush.msra.mxu0 %v72
  %178 = vmatpush.msra.mxu0 %v71
  %179 = vmatpush.msra.mxu0 %v70
  %180 = vmatmul.f32.gmra.mxu0 %v90
  %v181 = vpop.f32.mrf.mxu0
  %v182 = vadd.f32 %v159, %v181
  %183 = vmatmul.f32.gmra.mxu0 %v93
  %v184 = vpop.f32.mrf.mxu0
  %v185 = vadd.f32 %v162, %v184
  %186 = vdwg.mxu0
  %v187 = vmax.f32 %v182, 0.0
  %v188 = vmax.f32 %v185, 0.0
  %vm189 = vcmask 15360
  %190 = vst.msk [vmem:[%s3] sm:$0xff] %vm189, %v187
  %191 = vst.msk [vmem:[%s3 + $0x8] sm:$0xff] %vm189, %v188
  // Predicated region
  $region14: #{discriminator_forward.8} parent=0 // pred_check
    _
  $region15: #{discriminator_forward.8} parent=0 // pred_check_branch
    %193 = sbr.rel (0) target = $region17
  $region16: #{discriminator_forward.8} parent=0 // pred_region
    _
  $region17: #{discriminator_forward.8} parent=0 // pred_fallthru
    _
  // Predicated region
  $region18: #{discriminator_forward.8} parent=0 // pred_check
    _
  $region19: #{discriminator_forward.8} parent=0 // pred_check_branch
    %195 = sbr.rel (0) target = $region21
  $region20: #{discriminator_forward.8} parent=0 // pred_region
    _
  $region21: #{discriminator_forward.8} parent=0 // pred_fallthru
    _

</llo_original>
